<compile_context>
chip_gen: v7x
topology: tpu7x:2x2x1
jax: 0.10.0
libtpu: 0.0.40
codegen_flags: <defaults>
</compile_context>

<pallas_src>
import functools
import math

import jax
import jax.numpy as jnp
from jax import lax
from jax.experimental import pallas as pl
from jax.experimental.pallas import tpu as pltpu


# ----------------------------------------------------------------------------
# Config (mirrors GPTConfig in the PyTorch spec)
# ----------------------------------------------------------------------------
BLOCK_SIZE = 1024
VOCAB_SIZE = 4
N_LAYER = 2
N_HEAD = 2
N_EMBD = 64
LN_EPS = 1e-5
NEG_INF = -1e30


# ----------------------------------------------------------------------------
# In-kernel math helpers (traced inside the kernels)
# ----------------------------------------------------------------------------
def _gelu_tanh(x):
    # GELU(approximate='tanh'): 0.5*x*(1 + tanh(sqrt(2/pi)*(x + 0.044715*x^3)))
    c = math.sqrt(2.0 / math.pi)
    return 0.5 * x * (1.0 + jnp.tanh(c * (x + 0.044715 * x * x * x)))


def _layer_norm(x, w, b):
    # x: (rows, C) f32, w/b: (1, C) f32
    mu = jnp.mean(x, axis=-1, keepdims=True)
    xc = x - mu
    var = jnp.mean(xc * xc, axis=-1, keepdims=True)
    return xc * lax.rsqrt(var + LN_EPS) * w + b


# ----------------------------------------------------------------------------
# Kernel 1: token + position embedding (wte gather as one-hot matmul)
# ----------------------------------------------------------------------------
def embed_kernel(idx_ref, wte_ref, pos_ref, o_ref):
    # idx_ref: (TM, 1) int32 ; wte_ref: (V, C) ; pos_ref / o_ref: (TM, C)
    idx = idx_ref[...]
    tm = idx.shape[0]
    v = wte_ref.shape[0]
    iota_v = lax.broadcasted_iota(jnp.int32, (tm, v), 1)
    onehot = (iota_v == idx).astype(jnp.float32)               # tiny vocab gather
    tok = jnp.dot(onehot, wte_ref[...], preferred_element_type=jnp.float32)
    o_ref[...] = (tok + pos_ref[...]).astype(o_ref.dtype)


# ----------------------------------------------------------------------------
# Kernel 2: fused transformer Block (LN1 + causal attention + LN2 + MLP)
#   grid = (B,), one sequence per step, "parallel" over batch.
# ----------------------------------------------------------------------------
def block_kernel(n_head,
                 x_ref,
                 ln1w_ref, ln1b_ref,
                 wqkv_ref, bqkv_ref,
                 wproj_ref, bproj_ref,
                 ln2w_ref, ln2b_ref,
                 w1_ref, b1_ref, w2_ref, b2_ref,
                 o_ref):
    x = x_ref[0]                                   # (T, C) f32
    t, c = x.shape
    hd = c // n_head
    scale = 1.0 / math.sqrt(hd)

    # ---- attention branch: x = x + c_proj(attn(ln_1(x))) --------------------
    h = _layer_norm(x, ln1w_ref[...], ln1b_ref[...])
    qkv = jnp.dot(h, wqkv_ref[...], preferred_element_type=jnp.float32) + bqkv_ref[...]
    q_all = qkv[:, 0 * c:1 * c]
    k_all = qkv[:, 1 * c:2 * c]
    v_all = qkv[:, 2 * c:3 * c]

    row = lax.broadcasted_iota(jnp.int32, (t, t), 0)
    col = lax.broadcasted_iota(jnp.int32, (t, t), 1)
    causal = col <= row

    heads = []
    for hh in range(n_head):                       # tiny static unroll
        lo, hi = hh * hd, (hh + 1) * hd
        qh, kh, vh = q_all[:, lo:hi], k_all[:, lo:hi], v_all[:, lo:hi]
        # q @ k^T without materializing a transpose (rhs-contracted dot)
        s = lax.dot_general(qh, kh, (((1,), (1,)), ((), ())),
                            preferred_element_type=jnp.float32) * scale
        s = jnp.where(causal, s, NEG_INF)
        s = s - jnp.max(s, axis=-1, keepdims=True)
        p = jnp.exp(s)
        p = p / jnp.sum(p, axis=-1, keepdims=True)
        heads.append(jnp.dot(p, vh, preferred_element_type=jnp.float32))
    y = jnp.concatenate(heads, axis=-1)            # (T, C)

    attn_out = jnp.dot(y, wproj_ref[...], preferred_element_type=jnp.float32) + bproj_ref[...]
    x = x + attn_out

    # ---- MLP branch: x = x + c_proj(gelu(c_fc(ln_2(x)))) --------------------
    h2 = _layer_norm(x, ln2w_ref[...], ln2b_ref[...])
    hid = jnp.dot(h2, w1_ref[...], preferred_element_type=jnp.float32) + b1_ref[...]
    hid = _gelu_tanh(hid)
    mlp_out = jnp.dot(hid, w2_ref[...], preferred_element_type=jnp.float32) + b2_ref[...]
    x = x + mlp_out

    o_ref[0] = x.astype(o_ref.dtype)


# ----------------------------------------------------------------------------
# Kernel 3: final LayerNorm + tied lm_head (logits = ln_f(x) @ wte^T)
# ----------------------------------------------------------------------------
def lnf_head_kernel(x_ref, lnw_ref, lnb_ref, wte_t_ref, o_ref):
    h = _layer_norm(x_ref[...], lnw_ref[...], lnb_ref[...])
    o_ref[...] = jnp.dot(h, wte_t_ref[...],
                         preferred_element_type=jnp.float32).astype(o_ref.dtype)


# ----------------------------------------------------------------------------
# Wrappers (pallas_call plumbing)
# ----------------------------------------------------------------------------
def _mosaic_params(semantics):
    return pltpu.CompilerParams(dimension_semantics=semantics,
                                vmem_limit_bytes=32 * 1024 * 1024)


def embed_tokens(idx, wte, wpe):
    B, T = idx.shape
    V, C = wte.shape
    M = B * T
    tm = M if M <= 512 else 512
    idx2d = idx.reshape(M, 1).astype(jnp.int32)
    pos = jnp.broadcast_to(wpe[:T][None], (B, T, C)).reshape(M, C)

    out = pl.pallas_call(
        embed_kernel,
        out_shape=jax.ShapeDtypeStruct((M, C), wte.dtype),
        grid_spec=pltpu.PrefetchScalarGridSpec(
            num_scalar_prefetch=0,
            grid=(pl.cdiv(M, tm),),
            in_specs=[
                pl.BlockSpec((tm, 1), lambda i: (i, 0)),   # token ids
                pl.BlockSpec((V, C), lambda i: (0, 0)),    # wte (resident)
                pl.BlockSpec((tm, C), lambda i: (i, 0)),   # position emb (pre-gathered)
            ],
            out_specs=pl.BlockSpec((tm, C), lambda i: (i, 0)),
        ),
        compiler_params=_mosaic_params(("parallel",)),
    )(idx2d, wte, pos)
    return out.reshape(B, T, C)


def transformer_block(x, p, n_head):
    B, T, C = x.shape

    def full(shape):
        return pl.BlockSpec(shape, lambda b: (0, 0))

    return pl.pallas_call(
        functools.partial(block_kernel, n_head),
        out_shape=jax.ShapeDtypeStruct((B, T, C), x.dtype),
        grid_spec=pltpu.PrefetchScalarGridSpec(
            num_scalar_prefetch=0,
            grid=(B,),
            in_specs=[
                pl.BlockSpec((1, T, C), lambda b: (b, 0, 0)),   # x, per-sequence
                full((1, C)), full((1, C)),                     # ln_1 w, b
                full((C, 3 * C)), full((1, 3 * C)),             # c_attn W, b
                full((C, C)), full((1, C)),                     # attn c_proj W, b
                full((1, C)), full((1, C)),                     # ln_2 w, b
                full((C, 4 * C)), full((1, 4 * C)),             # mlp c_fc W, b
                full((4 * C, C)), full((1, C)),                 # mlp c_proj W, b
            ],
            out_specs=pl.BlockSpec((1, T, C), lambda b: (b, 0, 0)),
        ),
        compiler_params=_mosaic_params(("parallel",)),
    )(x, p["ln1_w"], p["ln1_b"], p["wqkv"], p["bqkv"],
      p["wproj"], p["bproj"], p["ln2_w"], p["ln2_b"],
      p["w1"], p["b1"], p["w2"], p["b2"])


def lnf_and_logits(x, lnw, lnb, wte):
    B, T, C = x.shape
    V = wte.shape[0]
    M = B * T
    tm = M if M <= 512 else 512
    x2d = x.reshape(M, C)
    wte_t = wte.T                                   # tied lm_head weight, (C, V)

    logits = pl.pallas_call(
        lnf_head_kernel,
        out_shape=jax.ShapeDtypeStruct((M, V), x.dtype),
        grid_spec=pltpu.PrefetchScalarGridSpec(
            num_scalar_prefetch=0,
            grid=(pl.cdiv(M, tm),),
            in_specs=[
                pl.BlockSpec((tm, C), lambda i: (i, 0)),
                pl.BlockSpec((1, C), lambda i: (0, 0)),
                pl.BlockSpec((1, C), lambda i: (0, 0)),
                pl.BlockSpec((C, V), lambda i: (0, 0)),
            ],
            out_specs=pl.BlockSpec((tm, V), lambda i: (i, 0)),
        ),
        compiler_params=_mosaic_params(("parallel",)),
    )(x2d, lnw, lnb, wte_t)
    return logits.reshape(B, T, V)


def gpt_forward(idx, params, n_head=N_HEAD):
    x = embed_tokens(idx, params["wte"], params["wpe"])
    for blk in params["blocks"]:
        x = transformer_block(x, blk, n_head)
    logits = lnf_and_logits(x, params["lnf_w"], params["lnf_b"], params["wte"])
    # TODO(synk): cross-entropy loss path (targets != None) not implemented; forward returns logits only.
    return logits


# ----------------------------------------------------------------------------
# Params + pure-JAX reference
# ----------------------------------------------------------------------------
def init_params(key):
    C, V, H = N_EMBD, VOCAB_SIZE, 4 * N_EMBD
    keys = jax.random.split(key, 2 + N_LAYER)

    def nrm(k, shape, std=0.02):
        return (std * jax.random.normal(k, shape)).astype(jnp.float32)

    params = {
        "wte": nrm(keys[0], (V, C)),
        "wpe": nrm(keys[1], (BLOCK_SIZE, C)),
        "lnf_w": jnp.ones((1, C), jnp.float32),
        "lnf_b": jnp.zeros((1, C), jnp.float32),
        "blocks": [],
    }
    for layer in range(N_LAYER):
        ks = jax.random.split(keys[2 + layer], 10)
        params["blocks"].append({
            "ln1_w": 1.0 + nrm(ks[0], (1, C), 0.1),
            "ln1_b": nrm(ks[1], (1, C), 0.1),
            "wqkv": nrm(ks[2], (C, 3 * C)),          # stored (in, out): x @ W + b
            "bqkv": nrm(ks[3], (1, 3 * C)),
            "wproj": nrm(ks[4], (C, C)),
            "bproj": nrm(ks[5], (1, C)),
            "ln2_w": 1.0 + nrm(ks[6], (1, C), 0.1),
            "ln2_b": nrm(ks[7], (1, C), 0.1),
            "w1": nrm(ks[8], (C, H)),
            "b1": nrm(ks[9], (1, H)),
            "w2": nrm(jax.random.fold_in(ks[8], 1), (H, C)),
            "b2": nrm(jax.random.fold_in(ks[9], 1), (1, C)),
        })
    return params


def _ref_ln(x, w, b):
    mu = jnp.mean(x, axis=-1, keepdims=True)
    var = jnp.mean((x - mu) ** 2, axis=-1, keepdims=True)
    return (x - mu) * lax.rsqrt(var + LN_EPS) * w + b


def gpt_reference(idx, params, n_head=N_HEAD):
    B, T = idx.shape
    C = params["wte"].shape[1]
    hd = C // n_head
    x = params["wte"][idx] + params["wpe"][:T][None]
    mask = jnp.tril(jnp.ones((T, T), dtype=bool))
    for p in params["blocks"]:
        h = _ref_ln(x, p["ln1_w"], p["ln1_b"])
        qkv = h @ p["wqkv"] + p["bqkv"]
        q, k, v = jnp.split(qkv, 3, axis=-1)
        to_heads = lambda z: z.reshape(B, T, n_head, hd).transpose(0, 2, 1, 3)
        q, k, v = to_heads(q), to_heads(k), to_heads(v)
        s = (q @ jnp.swapaxes(k, -1, -2)) / math.sqrt(hd)
        s = jnp.where(mask, s, NEG_INF)
        a = jax.nn.softmax(s, axis=-1)
        y = (a @ v).transpose(0, 2, 1, 3).reshape(B, T, C)
        x = x + (y @ p["wproj"] + p["bproj"])
        h2 = _ref_ln(x, p["ln2_w"], p["ln2_b"])
        hid = _gelu_tanh(h2 @ p["w1"] + p["b1"])
        x = x + (hid @ p["w2"] + p["b2"])
    x = _ref_ln(x, params["lnf_w"], params["lnf_b"])
    return x @ params["wte"].T


# ----------------------------------------------------------------------------
if __name__ == "__main__":
    B, T = 2, 8                                     # small batch / sequence

    key = jax.random.PRNGKey(0)
    kidx, kparams = jax.random.split(key)
    idx = jax.random.randint(kidx, (B, T), 0, VOCAB_SIZE, dtype=jnp.int32)
    params = init_params(kparams)

    logits = jax.jit(gpt_forward)(idx, params)
    logits = jax.block_until_ready(logits)
    assert logits.shape == (B, T, VOCAB_SIZE)

    ref = gpt_reference(idx, params)
    max_err = float(jnp.max(jnp.abs(logits - ref)))
    assert jnp.allclose(logits, ref, atol=1e-3, rtol=1e-3), max_err

    print("KERNEL_OK")
</pallas_src>

<mosaic_0001>
module attributes {stable_mosaic.version = 11 : i64} {
  func.func @embed_kernel(%arg0: i32, %arg1: memref<16x1xi32, #tpu.memory_space<vmem>>, %arg2: memref<4x64xf32, #tpu.memory_space<vmem>>, %arg3: memref<16x64xf32, #tpu.memory_space<vmem>>, %arg4: memref<16x64xf32, #tpu.memory_space<vmem>>) attributes {dimension_semantics = [#tpu.dimension_semantics<parallel>], iteration_bounds = array<i64: 1>, scalar_prefetch = 0 : i64, scratch_operands = 0 : i64, tpu.core_type = #tpu.core_type<tc>, window_params = [{transform_indices = @transform_0, window_bounds = array<i64: 16, 1>}, {pipeline_mode = #tpu.pipeline_mode<synchronous>, transform_indices = @transform_1, window_bounds = array<i64: 4, 64>}, {transform_indices = @transform_2, window_bounds = array<i64: 16, 64>}, {transform_indices = @transform_3, window_bounds = array<i64: 16, 64>}]} {
    %c0 = arith.constant 0 : index
    %c0_0 = arith.constant 0 : index
    %0 = vector.load %arg1[%c0, %c0_0] : memref<16x1xi32, #tpu.memory_space<vmem>>, vector<16x1xi32>
    %1 = tpu.iota {dimensions = array<i32: 1>} : vector<16x4xi32>
    %2 = vector.broadcast %0 : vector<16x1xi32> to vector<16x4xi32>
    %3 = arith.cmpi eq, %1, %2 : vector<16x4xi32>
    %4 = arith.extui %3 : vector<16x4xi1> to vector<16x4xi32>
    %5 = arith.sitofp %4 : vector<16x4xi32> to vector<16x4xf32>
    %c0_1 = arith.constant 0 : index
    %c0_2 = arith.constant 0 : index
    %6 = vector.load %arg2[%c0_1, %c0_2] : memref<4x64xf32, #tpu.memory_space<vmem>>, vector<4x64xf32>
    %cst = arith.constant dense<0.000000e+00> : vector<16x64xf32>
    %7 = tpu.matmul %5, %6, %cst {dimension_numbers = #tpu.dot_dimension_numbers<[1], [0], [0], [1], [0, 0, 1, 1], [], []>} : vector<16x4xf32>, vector<4x64xf32>, vector<16x64xf32> -> vector<16x64xf32>
    %c0_3 = arith.constant 0 : index
    %c0_4 = arith.constant 0 : index
    %8 = vector.load %arg3[%c0_3, %c0_4] : memref<16x64xf32, #tpu.memory_space<vmem>>, vector<16x64xf32>
    %9 = arith.addf %7, %8 : vector<16x64xf32>
    %c0_5 = arith.constant 0 : index
    %c0_6 = arith.constant 0 : index
    %10 = vector.load %arg4[%c0_5, %c0_6] : memref<16x64xf32, #tpu.memory_space<vmem>>, vector<16x64xf32>
    tpu.vector_store %arg4[%c0_5, %c0_6], %9 {strides = array<i32>} : memref<16x64xf32, #tpu.memory_space<vmem>>, vector<16x64xf32>,
    return
  }
  func.func @transform_0(%arg0: i32) -> (i32, i32) {
    %c0_i32 = arith.constant 0 : i32
    %c0_i32_0 = arith.constant 0 : i32
    return %arg0, %c0_i32 : i32, i32
  }
  func.func @transform_1(%arg0: i32) -> (i32, i32) {
    %c0_i32 = arith.constant 0 : i32
    %c0_i32_0 = arith.constant 0 : i32
    %c0_i32_1 = arith.constant 0 : i32
    return %c0_i32, %c0_i32_0 : i32, i32
  }
  func.func @transform_2(%arg0: i32) -> (i32, i32) {
    %c0_i32 = arith.constant 0 : i32
    %c0_i32_0 = arith.constant 0 : i32
    return %arg0, %c0_i32 : i32, i32
  }
  func.func @transform_3(%arg0: i32) -> (i32, i32) {
    %c0_i32 = arith.constant 0 : i32
    %c0_i32_0 = arith.constant 0 : i32
    return %arg0, %c0_i32 : i32, i32
  }
}

module attributes {stable_mosaic.version = 11 : i64} {
  func.func @block_kernel(%arg0: i32, %arg1: memref<1x8x64xf32, #tpu.memory_space<vmem>>, %arg2: memref<1x64xf32, #tpu.memory_space<vmem>>, %arg3: memref<1x64xf32, #tpu.memory_space<vmem>>, %arg4: memref<64x192xf32, #tpu.memory_space<vmem>>, %arg5: memref<1x192xf32, #tpu.memory_space<vmem>>, %arg6: memref<64x64xf32, #tpu.memory_space<vmem>>, %arg7: memref<1x64xf32, #tpu.memory_space<vmem>>, %arg8: memref<1x64xf32, #tpu.memory_space<vmem>>, %arg9: memref<1x64xf32, #tpu.memory_space<vmem>>, %arg10: memref<64x256xf32, #tpu.memory_space<vmem>>, %arg11: memref<1x256xf32, #tpu.memory_space<vmem>>, %arg12: memref<256x64xf32, #tpu.memory_space<vmem>>, %arg13: memref<1x64xf32, #tpu.memory_space<vmem>>, %arg14: memref<1x8x64xf32, #tpu.memory_space<vmem>>) attributes {dimension_semantics = [#tpu.dimension_semantics<parallel>], iteration_bounds = array<i64: 2>, scalar_prefetch = 0 : i64, scratch_operands = 0 : i64, tpu.core_type = #tpu.core_type<tc>, window_params = [{transform_indices = @transform_0, window_bounds = array<i64: 1, 8, 64>}, {pipeline_mode = #tpu.pipeline_mode<synchronous>, transform_indices = @transform_1, window_bounds = array<i64: 1, 64>}, {pipeline_mode = #tpu.pipeline_mode<synchronous>, transform_indices = @transform_2, window_bounds = array<i64: 1, 64>}, {pipeline_mode = #tpu.pipeline_mode<synchronous>, transform_indices = @transform_3, window_bounds = array<i64: 64, 192>}, {pipeline_mode = #tpu.pipeline_mode<synchronous>, transform_indices = @transform_4, window_bounds = array<i64: 1, 192>}, {pipeline_mode = #tpu.pipeline_mode<synchronous>, transform_indices = @transform_5, window_bounds = array<i64: 64, 64>}, {pipeline_mode = #tpu.pipeline_mode<synchronous>, transform_indices = @transform_6, window_bounds = array<i64: 1, 64>}, {pipeline_mode = #tpu.pipeline_mode<synchronous>, transform_indices = @transform_7, window_bounds = array<i64: 1, 64>}, {pipeline_mode = #tpu.pipeline_mode<synchronous>, transform_indices = @transform_8, window_bounds = array<i64: 1, 64>}, {pipeline_mode = #tpu.pipeline_mode<synchronous>, transform_indices = @transform_9, window_bounds = array<i64: 64, 256>}, {pipeline_mode = #tpu.pipeline_mode<synchronous>, transform_indices = @transform_10, window_bounds = array<i64: 1, 256>}, {pipeline_mode = #tpu.pipeline_mode<synchronous>, transform_indices = @transform_11, window_bounds = array<i64: 256, 64>}, {pipeline_mode = #tpu.pipeline_mode<synchronous>, transform_indices = @transform_12, window_bounds = array<i64: 1, 64>}, {transform_indices = @transform_13, window_bounds = array<i64: 1, 8, 64>}]} {
    %c0 = arith.constant 0 : index
    %c0_0 = arith.constant 0 : index
    %c0_1 = arith.constant 0 : index
    %0 = vector.load %arg1[%c0, %c0_0, %c0_1] : memref<1x8x64xf32, #tpu.memory_space<vmem>>, vector<1x8x64xf32>
    %1 = vector.shape_cast %0 : vector<1x8x64xf32> to vector<8x64xf32>
    %c0_2 = arith.constant 0 : index
    %c0_3 = arith.constant 0 : index
    %2 = vector.load %arg2[%c0_2, %c0_3] : memref<1x64xf32, #tpu.memory_space<vmem>>, vector<1x64xf32>
    %c0_4 = arith.constant 0 : index
    %c0_5 = arith.constant 0 : index
    %3 = vector.load %arg3[%c0_4, %c0_5] : memref<1x64xf32, #tpu.memory_space<vmem>>, vector<1x64xf32>
    %cst = arith.constant dense<0.000000e+00> : vector<8xf32>
    %4 = vector.multi_reduction <add>, %1, %cst [1] : vector<8x64xf32> to vector<8xf32>
    %5 = vector.shape_cast %4 : vector<8xf32> to vector<8x1xf32>
    %cst_6 = arith.constant 6.400000e+01 : f32
    %6 = vector.broadcast %cst_6 : f32 to vector<8x1xf32>
    %7 = arith.divf %5, %6 : vector<8x1xf32>
    %8 = vector.broadcast %7 : vector<8x1xf32> to vector<8x64xf32>
    %9 = arith.subf %1, %8 : vector<8x64xf32>
    %10 = arith.mulf %9, %9 : vector<8x64xf32>
    %cst_7 = arith.constant dense<0.000000e+00> : vector<8xf32>
    %11 = vector.multi_reduction <add>, %10, %cst_7 [1] : vector<8x64xf32> to vector<8xf32>
    %12 = vector.shape_cast %11 : vector<8xf32> to vector<8x1xf32>
    %cst_8 = arith.constant 6.400000e+01 : f32
    %13 = vector.broadcast %cst_8 : f32 to vector<8x1xf32>
    %14 = arith.divf %12, %13 : vector<8x1xf32>
    %cst_9 = arith.constant 9.99999974E-6 : f32
    %15 = vector.broadcast %cst_9 : f32 to vector<8x1xf32>
    %16 = arith.addf %14, %15 : vector<8x1xf32>
    %17 = math.rsqrt %16 : vector<8x1xf32>
    %18 = vector.broadcast %17 : vector<8x1xf32> to vector<8x64xf32>
    %19 = arith.mulf %9, %18 : vector<8x64xf32>
    %20 = vector.broadcast %2 : vector<1x64xf32> to vector<8x64xf32>
    %21 = arith.mulf %19, %20 : vector<8x64xf32>
    %22 = vector.broadcast %3 : vector<1x64xf32> to vector<8x64xf32>
    %23 = arith.addf %21, %22 : vector<8x64xf32>
    %c0_10 = arith.constant 0 : index
    %c0_11 = arith.constant 0 : index
    %24 = vector.load %arg4[%c0_10, %c0_11] : memref<64x192xf32, #tpu.memory_space<vmem>>, vector<64x192xf32>
    %cst_12 = arith.constant dense<0.000000e+00> : vector<8x192xf32>
    %25 = tpu.matmul %23, %24, %cst_12 {dimension_numbers = #tpu.dot_dimension_numbers<[1], [0], [0], [1], [0, 0, 1, 1], [], []>} : vector<8x64xf32>, vector<64x192xf32>, vector<8x192xf32> -> vector<8x192xf32>
    %c0_13 = arith.constant 0 : index
    %c0_14 = arith.constant 0 : index
    %26 = vector.load %arg5[%c0_13, %c0_14] : memref<1x192xf32, #tpu.memory_space<vmem>>, vector<1x192xf32>
    %27 = vector.broadcast %26 : vector<1x192xf32> to vector<8x192xf32>
    %28 = arith.addf %25, %27 : vector<8x192xf32>
    %29 = vector.extract_strided_slice %28 {offsets = [0, 0], sizes = [8, 64], strides = [1, 1]} : vector<8x192xf32> to vector<8x64xf32>
    %30 = vector.extract_strided_slice %28 {offsets = [0, 64], sizes = [8, 64], strides = [1, 1]} : vector<8x192xf32> to vector<8x64xf32>
    %31 = vector.extract_strided_slice %28 {offsets = [0, 128], sizes = [8, 64], strides = [1, 1]} : vector<8x192xf32> to vector<8x64xf32>
    %32 = tpu.iota {dimensions = array<i32: 0>} : vector<8x8xi32>
    %33 = tpu.iota {dimensions = array<i32: 1>} : vector<8x8xi32>
    %34 = arith.cmpi sle, %33, %32 : vector<8x8xi32>
    %35 = vector.extract_strided_slice %29 {offsets = [0, 0], sizes = [8, 32], strides = [1, 1]} : vector<8x64xf32> to vector<8x32xf32>
    %36 = vector.extract_strided_slice %30 {offsets = [0, 0], sizes = [8, 32], strides = [1, 1]} : vector<8x64xf32> to vector<8x32xf32>
    %37 = vector.extract_strided_slice %31 {offsets = [0, 0], sizes = [8, 32], strides = [1, 1]} : vector<8x64xf32> to vector<8x32xf32>
    %cst_15 = arith.constant dense<0.000000e+00> : vector<8x8xf32>
    %38 = tpu.matmul %35, %36, %cst_15 {dimension_numbers = #tpu.dot_dimension_numbers<[1], [1], [0], [0], [0, 0, 1, 0], [], []>} : vector<8x32xf32>, vector<8x32xf32>, vector<8x8xf32> -> vector<8x8xf32>
    %cst_16 = arith.constant 0.176776692 : f32
    %39 = vector.broadcast %cst_16 : f32 to vector<8x8xf32>
    %40 = arith.mulf %38, %39 : vector<8x8xf32>
    %cst_17 = arith.constant -1.000000e+30 : f32
    %41 = vector.broadcast %cst_17 : f32 to vector<8x8xf32>
    %42 = arith.select %34, %40, %41 : vector<8x8xi1>, vector<8x8xf32>
    %cst_18 = arith.constant dense<0xFF800000> : vector<8xf32>
    %43 = vector.multi_reduction <maximumf>, %42, %cst_18 [1] : vector<8x8xf32> to vector<8xf32>
    %44 = vector.shape_cast %43 : vector<8xf32> to vector<8x1xf32>
    %45 = vector.broadcast %44 : vector<8x1xf32> to vector<8x8xf32>
    %46 = arith.subf %42, %45 : vector<8x8xf32>
    %47 = math.exp %46 : vector<8x8xf32>
    %cst_19 = arith.constant dense<0.000000e+00> : vector<8xf32>
    %48 = vector.multi_reduction <add>, %47, %cst_19 [1] : vector<8x8xf32> to vector<8xf32>
    %49 = vector.shape_cast %48 : vector<8xf32> to vector<8x1xf32>
    %50 = vector.broadcast %49 : vector<8x1xf32> to vector<8x8xf32>
    %51 = arith.divf %47, %50 : vector<8x8xf32>
    %cst_20 = arith.constant dense<0.000000e+00> : vector<8x32xf32>
    %52 = tpu.matmul %51, %37, %cst_20 {dimension_numbers = #tpu.dot_dimension_numbers<[1], [0], [0], [1], [0, 0, 1, 1], [], []>} : vector<8x8xf32>, vector<8x32xf32>, vector<8x32xf32> -> vector<8x32xf32>
    %53 = vector.extract_strided_slice %29 {offsets = [0, 32], sizes = [8, 32], strides = [1, 1]} : vector<8x64xf32> to vector<8x32xf32>
    %54 = vector.extract_strided_slice %30 {offsets = [0, 32], sizes = [8, 32], strides = [1, 1]} : vector<8x64xf32> to vector<8x32xf32>
    %55 = vector.extract_strided_slice %31 {offsets = [0, 32], sizes = [8, 32], strides = [1, 1]} : vector<8x64xf32> to vector<8x32xf32>
    %cst_21 = arith.constant dense<0.000000e+00> : vector<8x8xf32>
    %56 = tpu.matmul %53, %54, %cst_21 {dimension_numbers = #tpu.dot_dimension_numbers<[1], [1], [0], [0], [0, 0, 1, 0], [], []>} : vector<8x32xf32>, vector<8x32xf32>, vector<8x8xf32> -> vector<8x8xf32>
    %cst_22 = arith.constant 0.176776692 : f32
    %57 = vector.broadcast %cst_22 : f32 to vector<8x8xf32>
    %58 = arith.mulf %56, %57 : vector<8x8xf32>
    %cst_23 = arith.constant -1.000000e+30 : f32
    %59 = vector.broadcast %cst_23 : f32 to vector<8x8xf32>
    %60 = arith.select %34, %58, %59 : vector<8x8xi1>, vector<8x8xf32>
    %cst_24 = arith.constant dense<0xFF800000> : vector<8xf32>
    %61 = vector.multi_reduction <maximumf>, %60, %cst_24 [1] : vector<8x8xf32> to vector<8xf32>
    %62 = vector.shape_cast %61 : vector<8xf32> to vector<8x1xf32>
    %63 = vector.broadcast %62 : vector<8x1xf32> to vector<8x8xf32>
    %64 = arith.subf %60, %63 : vector<8x8xf32>
    %65 = math.exp %64 : vector<8x8xf32>
    %cst_25 = arith.constant dense<0.000000e+00> : vector<8xf32>
    %66 = vector.multi_reduction <add>, %65, %cst_25 [1] : vector<8x8xf32> to vector<8xf32>
    %67 = vector.shape_cast %66 : vector<8xf32> to vector<8x1xf32>
    %68 = vector.broadcast %67 : vector<8x1xf32> to vector<8x8xf32>
    %69 = arith.divf %65, %68 : vector<8x8xf32>
    %cst_26 = arith.constant dense<0.000000e+00> : vector<8x32xf32>
    %70 = tpu.matmul %69, %55, %cst_26 {dimension_numbers = #tpu.dot_dimension_numbers<[1], [0], [0], [1], [0, 0, 1, 1], [], []>} : vector<8x8xf32>, vector<8x32xf32>, vector<8x32xf32> -> vector<8x32xf32>
    %71 = tpu.concatenate %52, %70 in 1 : vector<8x32xf32>, vector<8x32xf32> -> vector<8x64xf32>
    %c0_27 = arith.constant 0 : index
    %c0_28 = arith.constant 0 : index
    %72 = vector.load %arg6[%c0_27, %c0_28] : memref<64x64xf32, #tpu.memory_space<vmem>>, vector<64x64xf32>
    %cst_29 = arith.constant dense<0.000000e+00> : vector<8x64xf32>
    %73 = tpu.matmul %71, %72, %cst_29 {dimension_numbers = #tpu.dot_dimension_numbers<[1], [0], [0], [1], [0, 0, 1, 1], [], []>} : vector<8x64xf32>, vector<64x64xf32>, vector<8x64xf32> -> vector<8x64xf32>
    %c0_30 = arith.constant 0 : index
    %c0_31 = arith.constant 0 : index
    %74 = vector.load %arg7[%c0_30, %c0_31] : memref<1x64xf32, #tpu.memory_space<vmem>>, vector<1x64xf32>
    %75 = vector.broadcast %74 : vector<1x64xf32> to vector<8x64xf32>
    %76 = arith.addf %73, %75 : vector<8x64xf32>
    %77 = arith.addf %1, %76 : vector<8x64xf32>
    %c0_32 = arith.constant 0 : index
    %c0_33 = arith.constant 0 : index
    %78 = vector.load %arg8[%c0_32, %c0_33] : memref<1x64xf32, #tpu.memory_space<vmem>>, vector<1x64xf32>
    %c0_34 = arith.constant 0 : index
    %c0_35 = arith.constant 0 : index
    %79 = vector.load %arg9[%c0_34, %c0_35] : memref<1x64xf32, #tpu.memory_space<vmem>>, vector<1x64xf32>
    %cst_36 = arith.constant dense<0.000000e+00> : vector<8xf32>
    %80 = vector.multi_reduction <add>, %77, %cst_36 [1] : vector<8x64xf32> to vector<8xf32>
    %81 = vector.shape_cast %80 : vector<8xf32> to vector<8x1xf32>
    %cst_37 = arith.constant 6.400000e+01 : f32
    %82 = vector.broadcast %cst_37 : f32 to vector<8x1xf32>
    %83 = arith.divf %81, %82 : vector<8x1xf32>
    %84 = vector.broadcast %83 : vector<8x1xf32> to vector<8x64xf32>
    %85 = arith.subf %77, %84 : vector<8x64xf32>
    %86 = arith.mulf %85, %85 : vector<8x64xf32>
    %cst_38 = arith.constant dense<0.000000e+00> : vector<8xf32>
    %87 = vector.multi_reduction <add>, %86, %cst_38 [1] : vector<8x64xf32> to vector<8xf32>
    %88 = vector.shape_cast %87 : vector<8xf32> to vector<8x1xf32>
    %cst_39 = arith.constant 6.400000e+01 : f32
    %89 = vector.broadcast %cst_39 : f32 to vector<8x1xf32>
    %90 = arith.divf %88, %89 : vector<8x1xf32>
    %cst_40 = arith.constant 9.99999974E-6 : f32
    %91 = vector.broadcast %cst_40 : f32 to vector<8x1xf32>
    %92 = arith.addf %90, %91 : vector<8x1xf32>
    %93 = math.rsqrt %92 : vector<8x1xf32>
    %94 = vector.broadcast %93 : vector<8x1xf32> to vector<8x64xf32>
    %95 = arith.mulf %85, %94 : vector<8x64xf32>
    %96 = vector.broadcast %78 : vector<1x64xf32> to vector<8x64xf32>
    %97 = arith.mulf %95, %96 : vector<8x64xf32>
    %98 = vector.broadcast %79 : vector<1x64xf32> to vector<8x64xf32>
    %99 = arith.addf %97, %98 : vector<8x64xf32>
    %c0_41 = arith.constant 0 : index
    %c0_42 = arith.constant 0 : index
    %100 = vector.load %arg10[%c0_41, %c0_42] : memref<64x256xf32, #tpu.memory_space<vmem>>, vector<64x256xf32>
    %cst_43 = arith.constant dense<0.000000e+00> : vector<8x256xf32>
    %101 = tpu.matmul %99, %100, %cst_43 {dimension_numbers = #tpu.dot_dimension_numbers<[1], [0], [0], [1], [0, 0, 1, 1], [], []>} : vector<8x64xf32>, vector<64x256xf32>, vector<8x256xf32> -> vector<8x256xf32>
    %c0_44 = arith.constant 0 : index
    %c0_45 = arith.constant 0 : index
    %102 = vector.load %arg11[%c0_44, %c0_45] : memref<1x256xf32, #tpu.memory_space<vmem>>, vector<1x256xf32>
    %103 = vector.broadcast %102 : vector<1x256xf32> to vector<8x256xf32>
    %104 = arith.addf %101, %103 : vector<8x256xf32>
    %cst_46 = arith.constant 5.000000e-01 : f32
    %105 = vector.broadcast %cst_46 : f32 to vector<8x256xf32>
    %106 = arith.mulf %105, %104 : vector<8x256xf32>
    %cst_47 = arith.constant 4.471500e-02 : f32
    %107 = vector.broadcast %cst_47 : f32 to vector<8x256xf32>
    %108 = arith.mulf %107, %104 : vector<8x256xf32>
    %109 = arith.mulf %108, %104 : vector<8x256xf32>
    %110 = arith.mulf %109, %104 : vector<8x256xf32>
    %111 = arith.addf %104, %110 : vector<8x256xf32>
    %cst_48 = arith.constant 0.797884583 : f32
    %112 = vector.broadcast %cst_48 : f32 to vector<8x256xf32>
    %113 = arith.mulf %112, %111 : vector<8x256xf32>
    %114 = math.tanh %113 : vector<8x256xf32>
    %cst_49 = arith.constant 1.000000e+00 : f32
    %115 = vector.broadcast %cst_49 : f32 to vector<8x256xf32>
    %116 = arith.addf %115, %114 : vector<8x256xf32>
    %117 = arith.mulf %106, %116 : vector<8x256xf32>
    %c0_50 = arith.constant 0 : index
    %c0_51 = arith.constant 0 : index
    %118 = vector.load %arg12[%c0_50, %c0_51] : memref<256x64xf32, #tpu.memory_space<vmem>>, vector<256x64xf32>
    %cst_52 = arith.constant dense<0.000000e+00> : vector<8x64xf32>
    %119 = tpu.matmul %117, %118, %cst_52 {dimension_numbers = #tpu.dot_dimension_numbers<[1], [0], [0], [1], [0, 0, 1, 1], [], []>} : vector<8x256xf32>, vector<256x64xf32>, vector<8x64xf32> -> vector<8x64xf32>
    %c0_53 = arith.constant 0 : index
    %c0_54 = arith.constant 0 : index
    %120 = vector.load %arg13[%c0_53, %c0_54] : memref<1x64xf32, #tpu.memory_space<vmem>>, vector<1x64xf32>
    %121 = vector.broadcast %120 : vector<1x64xf32> to vector<8x64xf32>
    %122 = arith.addf %119, %121 : vector<8x64xf32>
    %123 = arith.addf %77, %122 : vector<8x64xf32>
    %c0_55 = arith.constant 0 : index
    %c0_56 = arith.constant 0 : index
    %c0_57 = arith.constant 0 : index
    %124 = vector.load %arg14[%c0_55, %c0_56, %c0_57] : memref<1x8x64xf32, #tpu.memory_space<vmem>>, vector<1x8x64xf32>
    %125 = vector.shape_cast %124 : vector<1x8x64xf32> to vector<8x64xf32>
    %126 = vector.shape_cast %123 : vector<8x64xf32> to vector<1x8x64xf32>
    tpu.vector_store %arg14[%c0_55, %c0_56, %c0_57], %126 {strides = array<i32>} : memref<1x8x64xf32, #tpu.memory_space<vmem>>, vector<1x8x64xf32>,
    return
  }
  func.func @transform_0(%arg0: i32) -> (i32, i32, i32) {
    %c0_i32 = arith.constant 0 : i32
    %c0_i32_0 = arith.constant 0 : i32
    %c0_i32_1 = arith.constant 0 : i32
    return %arg0, %c0_i32, %c0_i32_0 : i32, i32, i32
  }
  func.func @transform_1(%arg0: i32) -> (i32, i32) {
    %c0_i32 = arith.constant 0 : i32
    %c0_i32_0 = arith.constant 0 : i32
    %c0_i32_1 = arith.constant 0 : i32
    return %c0_i32, %c0_i32_0 : i32, i32
  }
  func.func @transform_2(%arg0: i32) -> (i32, i32) {
    %c0_i32 = arith.constant 0 : i32
    %c0_i32_0 = arith.constant 0 : i32
    %c0_i32_1 = arith.constant 0 : i32
    return %c0_i32, %c0_i32_0 : i32, i32
  }
  func.func @transform_3(%arg0: i32) -> (i32, i32) {
    %c0_i32 = arith.constant 0 : i32
    %c0_i32_0 = arith.constant 0 : i32
    %c0_i32_1 = arith.constant 0 : i32
    return %c0_i32, %c0_i32_0 : i32, i32
  }
  func.func @transform_4(%arg0: i32) -> (i32, i32) {
    %c0_i32 = arith.constant 0 : i32
    %c0_i32_0 = arith.constant 0 : i32
    %c0_i32_1 = arith.constant 0 : i32
    return %c0_i32, %c0_i32_0 : i32, i32
  }
  func.func @transform_5(%arg0: i32) -> (i32, i32) {
    %c0_i32 = arith.constant 0 : i32
    %c0_i32_0 = arith.constant 0 : i32
    %c0_i32_1 = arith.constant 0 : i32
    return %c0_i32, %c0_i32_0 : i32, i32
  }
  func.func @transform_6(%arg0: i32) -> (i32, i32) {
    %c0_i32 = arith.constant 0 : i32
    %c0_i32_0 = arith.constant 0 : i32
    %c0_i32_1 = arith.constant 0 : i32
    return %c0_i32, %c0_i32_0 : i32, i32
  }
  func.func @transform_7(%arg0: i32) -> (i32, i32) {
    %c0_i32 = arith.constant 0 : i32
    %c0_i32_0 = arith.constant 0 : i32
    %c0_i32_1 = arith.constant 0 : i32
    return %c0_i32, %c0_i32_0 : i32, i32
  }
  func.func @transform_8(%arg0: i32) -> (i32, i32) {
    %c0_i32 = arith.constant 0 : i32
    %c0_i32_0 = arith.constant 0 : i32
    %c0_i32_1 = arith.constant 0 : i32
    return %c0_i32, %c0_i32_0 : i32, i32
  }
  func.func @transform_9(%arg0: i32) -> (i32, i32) {
    %c0_i32 = arith.constant 0 : i32
    %c0_i32_0 = arith.constant 0 : i32
    %c0_i32_1 = arith.constant 0 : i32
    return %c0_i32, %c0_i32_0 : i32, i32
  }
  func.func @transform_10(%arg0: i32) -> (i32, i32) {
    %c0_i32 = arith.constant 0 : i32
    %c0_i32_0 = arith.constant 0 : i32
    %c0_i32_1 = arith.constant 0 : i32
    return %c0_i32, %c0_i32_0 : i32, i32
  }
  func.func @transform_11(%arg0: i32) -> (i32, i32) {
    %c0_i32 = arith.constant 0 : i32
    %c0_i32_0 = arith.constant 0 : i32
    %c0_i32_1 = arith.constant 0 : i32
    return %c0_i32, %c0_i32_0 : i32, i32
  }
  func.func @transform_12(%arg0: i32) -> (i32, i32) {
    %c0_i32 = arith.constant 0 : i32
    %c0_i32_0 = arith.constant 0 : i32
    %c0_i32_1 = arith.constant 0 : i32
    return %c0_i32, %c0_i32_0 : i32, i32
  }
  func.func @transform_13(%arg0: i32) -> (i32, i32, i32) {
    %c0_i32 = arith.constant 0 : i32
    %c0_i32_0 = arith.constant 0 : i32
    %c0_i32_1 = arith.constant 0 : i32
    return %arg0, %c0_i32, %c0_i32_0 : i32, i32, i32
  }
}

module attributes {stable_mosaic.version = 11 : i64} {
  func.func @lnf_head_kernel(%arg0: i32, %arg1: memref<16x64xf32, #tpu.memory_space<vmem>>, %arg2: memref<1x64xf32, #tpu.memory_space<vmem>>, %arg3: memref<1x64xf32, #tpu.memory_space<vmem>>, %arg4: memref<64x4xf32, #tpu.memory_space<vmem>>, %arg5: memref<16x4xf32, #tpu.memory_space<vmem>>) attributes {dimension_semantics = [#tpu.dimension_semantics<parallel>], iteration_bounds = array<i64: 1>, scalar_prefetch = 0 : i64, scratch_operands = 0 : i64, tpu.core_type = #tpu.core_type<tc>, window_params = [{transform_indices = @transform_0, window_bounds = array<i64: 16, 64>}, {pipeline_mode = #tpu.pipeline_mode<synchronous>, transform_indices = @transform_1, window_bounds = array<i64: 1, 64>}, {pipeline_mode = #tpu.pipeline_mode<synchronous>, transform_indices = @transform_2, window_bounds = array<i64: 1, 64>}, {pipeline_mode = #tpu.pipeline_mode<synchronous>, transform_indices = @transform_3, window_bounds = array<i64: 64, 4>}, {transform_indices = @transform_4, window_bounds = array<i64: 16, 4>}]} {
    %c0 = arith.constant 0 : index
    %c0_0 = arith.constant 0 : index
    %0 = vector.load %arg1[%c0, %c0_0] : memref<16x64xf32, #tpu.memory_space<vmem>>, vector<16x64xf32>
    %c0_1 = arith.constant 0 : index
    %c0_2 = arith.constant 0 : index
    %1 = vector.load %arg2[%c0_1, %c0_2] : memref<1x64xf32, #tpu.memory_space<vmem>>, vector<1x64xf32>
    %c0_3 = arith.constant 0 : index
    %c0_4 = arith.constant 0 : index
    %2 = vector.load %arg3[%c0_3, %c0_4] : memref<1x64xf32, #tpu.memory_space<vmem>>, vector<1x64xf32>
    %cst = arith.constant dense<0.000000e+00> : vector<16xf32>
    %3 = vector.multi_reduction <add>, %0, %cst [1] : vector<16x64xf32> to vector<16xf32>
    %4 = vector.shape_cast %3 : vector<16xf32> to vector<16x1xf32>
    %cst_5 = arith.constant 6.400000e+01 : f32
    %5 = vector.broadcast %cst_5 : f32 to vector<16x1xf32>
    %6 = arith.divf %4, %5 : vector<16x1xf32>
    %7 = vector.broadcast %6 : vector<16x1xf32> to vector<16x64xf32>
    %8 = arith.subf %0, %7 : vector<16x64xf32>
    %9 = arith.mulf %8, %8 : vector<16x64xf32>
    %cst_6 = arith.constant dense<0.000000e+00> : vector<16xf32>
    %10 = vector.multi_reduction <add>, %9, %cst_6 [1] : vector<16x64xf32> to vector<16xf32>
    %11 = vector.shape_cast %10 : vector<16xf32> to vector<16x1xf32>
    %cst_7 = arith.constant 6.400000e+01 : f32
    %12 = vector.broadcast %cst_7 : f32 to vector<16x1xf32>
    %13 = arith.divf %11, %12 : vector<16x1xf32>
    %cst_8 = arith.constant 9.99999974E-6 : f32
    %14 = vector.broadcast %cst_8 : f32 to vector<16x1xf32>
    %15 = arith.addf %13, %14 : vector<16x1xf32>
    %16 = math.rsqrt %15 : vector<16x1xf32>
    %17 = vector.broadcast %16 : vector<16x1xf32> to vector<16x64xf32>
    %18 = arith.mulf %8, %17 : vector<16x64xf32>
    %19 = vector.broadcast %1 : vector<1x64xf32> to vector<16x64xf32>
    %20 = arith.mulf %18, %19 : vector<16x64xf32>
    %21 = vector.broadcast %2 : vector<1x64xf32> to vector<16x64xf32>
    %22 = arith.addf %20, %21 : vector<16x64xf32>
    %c0_9 = arith.constant 0 : index
    %c0_10 = arith.constant 0 : index
    %23 = vector.load %arg4[%c0_9, %c0_10] : memref<64x4xf32, #tpu.memory_space<vmem>>, vector<64x4xf32>
    %cst_11 = arith.constant dense<0.000000e+00> : vector<16x4xf32>
    %24 = tpu.matmul %22, %23, %cst_11 {dimension_numbers = #tpu.dot_dimension_numbers<[1], [0], [0], [1], [0, 0, 1, 1], [], []>} : vector<16x64xf32>, vector<64x4xf32>, vector<16x4xf32> -> vector<16x4xf32>
    %c0_12 = arith.constant 0 : index
    %c0_13 = arith.constant 0 : index
    %25 = vector.load %arg5[%c0_12, %c0_13] : memref<16x4xf32, #tpu.memory_space<vmem>>, vector<16x4xf32>
    tpu.vector_store %arg5[%c0_12, %c0_13], %24 {strides = array<i32>} : memref<16x4xf32, #tpu.memory_space<vmem>>, vector<16x4xf32>,
    return
  }
  func.func @transform_0(%arg0: i32) -> (i32, i32) {
    %c0_i32 = arith.constant 0 : i32
    %c0_i32_0 = arith.constant 0 : i32
    return %arg0, %c0_i32 : i32, i32
  }
  func.func @transform_1(%arg0: i32) -> (i32, i32) {
    %c0_i32 = arith.constant 0 : i32
    %c0_i32_0 = arith.constant 0 : i32
    %c0_i32_1 = arith.constant 0 : i32
    return %c0_i32, %c0_i32_0 : i32, i32
  }
  func.func @transform_2(%arg0: i32) -> (i32, i32) {
    %c0_i32 = arith.constant 0 : i32
    %c0_i32_0 = arith.constant 0 : i32
    %c0_i32_1 = arith.constant 0 : i32
    return %c0_i32, %c0_i32_0 : i32, i32
  }
  func.func @transform_3(%arg0: i32) -> (i32, i32) {
    %c0_i32 = arith.constant 0 : i32
    %c0_i32_0 = arith.constant 0 : i32
    %c0_i32_1 = arith.constant 0 : i32
    return %c0_i32, %c0_i32_0 : i32, i32
  }
  func.func @transform_4(%arg0: i32) -> (i32, i32) {
    %c0_i32 = arith.constant 0 : i32
    %c0_i32_0 = arith.constant 0 : i32
    return %arg0, %c0_i32 : i32, i32
  }
}

</mosaic_0001>

<llo_original>
// kernel: gpt_forward.4
$region0: #{gpt_forward.4}
  #allocation0 [shape = 'u32[]', space=smem, size = 0x4, offset = 0x4, fixed_abs, tag = 'smem constant byte address 0x4 - core index']
  #allocation1 [shape = 'u32[144,128]{1,0:T(1,128)}', space=vmem, size = 0x12000, scoped, tag = 'internal scratch']
  %s0 = inlined_call_operand.vmem [shape: s32[16,1], index: 0, kind: input, shape index: {}]
  %s1 = inlined_call_operand.vmem [shape: f32[4,64], index: 1, kind: input, shape index: {}]
  %s2 = inlined_call_operand.vmem [shape: f32[16,64], index: 2, kind: input, shape index: {}]
  %s3 = inlined_call_operand.vmem [shape: f32[16,64], index: 3, kind: output, shape index: {}]
  %s4 = sld [smem:[#allocation0]]
  $region22: #{gpt_forward.4} parent=0
    _
  %s6 = ssub.s32 1, %s4
  %s7 = scalar_select 0, %s6, %s4
  // Predicated region
  $region2: #{gpt_forward.4} parent=0 // pred_check
    _
  $region3: #{gpt_forward.4} parent=0 // pred_check_branch
    %9 = sbr.rel (0) target = $region5
  $region4: #{gpt_forward.4} parent=0 // pred_region
    _
  $region5: #{gpt_forward.4} parent=0 // pred_fallthru
    _
  // Predicated region
  $region6: #{gpt_forward.4} parent=0 // pred_check
    _
  $region7: #{gpt_forward.4} parent=0 // pred_check_branch
    %11 = sbr.rel (0) target = $region9
  $region8: #{gpt_forward.4} parent=0 // pred_region
    _
  $region9: #{gpt_forward.4} parent=0 // pred_fallthru
    _
  // Predicated region
  $region10: #{gpt_forward.4} parent=0 // pred_check
    _
  $region11: #{gpt_forward.4} parent=0 // pred_check_branch
    %13 = sbr.rel (0) target = $region13
  $region12: #{gpt_forward.4} parent=0 // pred_region
    _
  $region13: #{gpt_forward.4} parent=0 // pred_fallthru
    _
  %v14 = vld [vmem:[%s0] sm:$0xff]
  %v15 = vld [vmem:[%s0 + $0x8] sm:$0xff]
  %v16 = vlaneseq
  %v17 = vand.u32 %v16, 127
  %18 = vset.pattern.permute.xlu0 0
  %19 = vperm.xlu0 %18, %v14
  %v20 = vpop.permute.xlu0 %19
  %21 = vset.pattern.permute.xlu0 0
  %22 = vperm.xlu0 %21, %v15
  %v23 = vpop.permute.xlu0 %22
  %vm24 = vcmp.eq.s32.totalorder %v17, %v20
  %vm25 = vcmp.eq.s32.totalorder %v17, %v23
  %v26 = vsel %vm24, 1, 0
  %v27 = vsel %vm25, 1, 0
  %v28 = vcvt.s32.f32 %v26
  %v29 = vcvt.s32.f32 %v27
  %v30 = vld [vmem:[%s1] sm:$0xf]
  %v31 = vld [vmem:[%s2] sm:$0xff]
  %v32 = vld [vmem:[%s2 + $0x8] sm:$0xff]
  %vm33 = vcmask 31744
  %v35 = vsel %vm33, %v28, 0
  %v38 = vsel %vm33, %v29, 0
  %vm40 = vcmask 1043456
  %v42 = vsel %vm40, %v30, 0
  %44 = vmatprep.subr.mxu0 0.0
  %45 = vmatpush1.msra.mxu0 %v42
  %46 = vmatprep.subr.mxu0 0.0
  %47 = vmatpush1.msra.mxu0 0.0
  %48 = vmatprep.subr.mxu0 0.0
  %49 = vmatpush1.msra.mxu0 0.0
  %50 = vmatprep.subr.mxu0 0.0
  %51 = vmatpush1.msra.mxu0 0.0
  %52 = vmatprep.subr.mxu0 0.0
  %53 = vmatpush1.msra.mxu0 0.0
  %54 = vmatprep.subr.mxu0 0.0
  %55 = vmatpush1.msra.mxu0 0.0
  %56 = vmatprep.subr.mxu0 0.0
  %57 = vmatpush1.msra.mxu0 0.0
  %58 = vmatprep.subr.mxu0 0.0
  %59 = vmatpush1.msra.mxu0 0.0
  %60 = vmatprep.subr.mxu0 0.0
  %61 = vmatpush1.msra.mxu0 0.0
  %62 = vmatprep.subr.mxu0 0.0
  %63 = vmatpush1.msra.mxu0 0.0
  %64 = vmatprep.subr.mxu0 0.0
  %65 = vmatpush1.msra.mxu0 0.0
  %66 = vmatprep.subr.mxu0 0.0
  %67 = vmatpush1.msra.mxu0 0.0
  %68 = vmatprep.subr.mxu0 0.0
  %69 = vmatpush1.msra.mxu0 0.0
  %70 = vmatprep.subr.mxu0 0.0
  %71 = vmatpush1.msra.mxu0 0.0
  %72 = vmatprep.subr.mxu0 0.0
  %73 = vmatpush1.msra.mxu0 0.0
  %74 = vmatprep.subr.mxu0 0.0
  %75 = vmatpush1.msra.mxu0 0.0
  %76 = vmatprep.subr.mxu0 0.0
  %77 = vmatpush1.msra.mxu0 0.0
  %78 = vmatprep.subr.mxu0 0.0
  %79 = vmatpush1.msra.mxu0 0.0
  %80 = vmatprep.subr.mxu0 0.0
  %81 = vmatpush1.msra.mxu0 0.0
  %82 = vmatprep.subr.mxu0 0.0
  %83 = vmatpush1.msra.mxu0 0.0
  %84 = vmatprep.subr.mxu0 0.0
  %85 = vmatpush1.msra.mxu0 0.0
  %86 = vmatprep.subr.mxu0 0.0
  %87 = vmatpush1.msra.mxu0 0.0
  %88 = vmatprep.subr.mxu0 0.0
  %89 = vmatpush1.msra.mxu0 0.0
  %90 = vmatprep.subr.mxu0 0.0
  %91 = vmatpush1.msra.mxu0 0.0
  %92 = vmatprep.subr.mxu0 0.0
  %93 = vmatpush1.msra.mxu0 0.0
  %94 = vmatprep.subr.mxu0 0.0
  %95 = vmatpush1.msra.mxu0 0.0
  %96 = vmatprep.subr.mxu0 0.0
  %97 = vmatpush1.msra.mxu0 0.0
  %98 = vmatprep.subr.mxu0 0.0
  %99 = vmatpush1.msra.mxu0 0.0
  %100 = vmatprep.subr.mxu0 0.0
  %101 = vmatpush1.msra.mxu0 0.0
  %102 = vmatprep.subr.mxu0 0.0
  %103 = vmatpush1.msra.mxu0 0.0
  %104 = vmatprep.subr.mxu0 0.0
  %105 = vmatpush1.msra.mxu0 0.0
  %106 = vmatprep.subr.mxu0 0.0
  %107 = vmatpush1.msra.mxu0 0.0
  %108 = vmatprep.mubr.f32.mxu0 0.0
  %109 = vmatmul.mubr.f32.gmra.mrb[0].mxu0 %v35
  %v110 = vpop.f32.mrb[0].mxu0
  %v111 = vadd.f32 %v31, %v110
  %v112 = vpop.f32.mrb[0].mxu0
  %113 = vmatprep.mubr.f32.mxu0 0.0
  %114 = vmatmul.mubr.f32.gmra.mrb[0].mxu0 %v38
  %v115 = vpop.f32.mrb[0].mxu0
  %v116 = vadd.f32 %v32, %v115
  %v117 = vpop.f32.mrb[0].mxu0
  %118 = vdwg.mxu0
  %vm119 = vcmask 523264
  %120 = vst.msk [vmem:[%s3] sm:$0xff] %vm119, %v111
  %121 = vst.msk [vmem:[%s3 + $0x8] sm:$0xff] %vm119, %v116
  // Predicated region
  $region14: #{gpt_forward.4} parent=0 // pred_check
    _
  $region15: #{gpt_forward.4} parent=0 // pred_check_branch
    %123 = sbr.rel (0) target = $region17
  $region16: #{gpt_forward.4} parent=0 // pred_region
    _
  $region17: #{gpt_forward.4} parent=0 // pred_fallthru
    _
  // Predicated region
  $region18: #{gpt_forward.4} parent=0 // pred_check
    _
  $region19: #{gpt_forward.4} parent=0 // pred_check_branch
    %125 = sbr.rel (0) target = $region21
  $region20: #{gpt_forward.4} parent=0 // pred_region
    _
  $region21: #{gpt_forward.4} parent=0 // pred_fallthru
    _

// kernel: gpt_forward.7
$region0: #{gpt_forward.7}
  #allocation0 [shape = 'u32[]', space=smem, size = 0x4, offset = 0x4, fixed_abs, tag = 'smem constant byte address 0x4 - core index']
  #allocation1 [shape = 'u32[144,128]{1,0:T(1,128)}', space=vmem, size = 0x12000, scoped, tag = 'internal scratch']
  %s0 = inlined_call_operand.vmem [shape: f32[16,64], index: 0, kind: input, shape index: {}]
  %s1 = inlined_call_operand.vmem [shape: f32[1,64], index: 1, kind: input, shape index: {}]
  %s2 = inlined_call_operand.vmem [shape: f32[1,64], index: 2, kind: input, shape index: {}]
  %s3 = inlined_call_operand.vmem [shape: f32[64,4], index: 3, kind: input, shape index: {}]
  %s4 = inlined_call_operand.vmem [shape: f32[16,4], index: 4, kind: output, shape index: {}]
  %s5 = sld [smem:[#allocation0]]
  $region26: #{gpt_forward.7} parent=0
    _
  %s7 = ssub.s32 1, %s5
  %s8 = scalar_select 0, %s7, %s5
  // Predicated region
  $region2: #{gpt_forward.7} parent=0 // pred_check
    _
  $region3: #{gpt_forward.7} parent=0 // pred_check_branch
    %10 = sbr.rel (0) target = $region5
  $region4: #{gpt_forward.7} parent=0 // pred_region
    _
  $region5: #{gpt_forward.7} parent=0 // pred_fallthru
    _
  // Predicated region
  $region6: #{gpt_forward.7} parent=0 // pred_check
    _
  $region7: #{gpt_forward.7} parent=0 // pred_check_branch
    %12 = sbr.rel (0) target = $region9
  $region8: #{gpt_forward.7} parent=0 // pred_region
    _
  $region9: #{gpt_forward.7} parent=0 // pred_fallthru
    _
  // Predicated region
  $region10: #{gpt_forward.7} parent=0 // pred_check
    _
  $region11: #{gpt_forward.7} parent=0 // pred_check_branch
    %14 = sbr.rel (0) target = $region13
  $region12: #{gpt_forward.7} parent=0 // pred_region
    _
  $region13: #{gpt_forward.7} parent=0 // pred_fallthru
    _
  // Predicated region
  $region14: #{gpt_forward.7} parent=0 // pred_check
    _
  $region15: #{gpt_forward.7} parent=0 // pred_check_branch
    %16 = sbr.rel (0) target = $region17
  $region16: #{gpt_forward.7} parent=0 // pred_region
    _
  $region17: #{gpt_forward.7} parent=0 // pred_fallthru
    _
  %v17 = vld [vmem:[%s0] sm:$0xff]
  %v18 = vld [vmem:[%s0 + $0x8] sm:$0xff]
  %v19 = vld [vmem:[%s1] sm:$0x1]
  %v20 = vld [vmem:[%s2] sm:$0x1]
  %vm21 = vcmask 523264
  %v22 = vsel %vm21, %v17, 0.0
  %23 = vadd.xlane.f32.xlu0 %v22
  %v24 = vpop.xlane.xlu0 %23
  %v25 = vsel %vm21, %v18, 0.0
  %26 = vadd.xlane.f32.xlu0 %v25
  %v27 = vpop.xlane.xlu0 %26
  %v28 = vrcp.pop 64.0
  %v29 = vmul.f32 %v24, %v28
  %v30 = vmul.f32 %v27, %v28
  %v31 = vsub.f32 %v17, %v29
  %v32 = vsub.f32 %v18, %v30
  %v33 = vmul.f32 %v31, %v31
  %v34 = vmul.f32 %v32, %v32
  %v35 = vsel %vm21, %v33, 0.0
  %36 = vadd.xlane.f32.xlu0 %v35
  %v37 = vpop.xlane.xlu0 %36
  %v38 = vsel %vm21, %v34, 0.0
  %39 = vadd.xlane.f32.xlu0 %v38
  %v40 = vpop.xlane.xlu0 %39
  %v41 = vmul.f32 %v37, %v28
  %v42 = vmul.f32 %v40, %v28
  %v43 = vadd.f32 %v41, 1e-05
  %v44 = vadd.f32 %v42, 1e-05
  %v45 = vrsqrt.pop %v43
  %v46 = vrsqrt.pop %v44
  %v47 = vmul.f32 %v31, %v45
  %v48 = vmul.f32 %v32, %v46
  %v50 = vlaneseq
  %v51 = vshrl.u32 %v50, 7
  %v52 = vsub.s32 0, %v51
  %v53 = vrot.slane %v19, %v52
  %v55 = vmul.f32 %v47, %v53
  %v56 = vmul.f32 %v48, %v53
  %v58 = vlaneseq
  %v59 = vshrl.u32 %v58, 7
  %v60 = vsub.s32 0, %v59
  %v61 = vrot.slane %v20, %v60
  %v63 = vadd.f32 %v55, %v61
  %v64 = vadd.f32 %v56, %v61
  %v65 = vld [vmem:[%s3] sm:$0xff]
  %v66 = vld [vmem:[%s3 + $0x8] sm:$0xff]
  %v67 = vld [vmem:[%s3 + $0x10] sm:$0xff]
  %v68 = vld [vmem:[%s3 + $0x18] sm:$0xff]
  %v69 = vld [vmem:[%s3 + $0x20] sm:$0xff]
  %v70 = vld [vmem:[%s3 + $0x28] sm:$0xff]
  %v71 = vld [vmem:[%s3 + $0x30] sm:$0xff]
  %v72 = vld [vmem:[%s3 + $0x38] sm:$0xff]
  %v74 = vsel %vm21, %v63, 0
  %v77 = vsel %vm21, %v64, 0
  %79 = vmatprep.subr.mxu0 0.0
  %80 = vmatpush1.msra.mxu0 %v65
  %81 = vmatprep.subr.mxu0 0.0
  %82 = vmatpush1.msra.mxu0 %v66
  %83 = vmatprep.subr.mxu0 0.0
  %84 = vmatpush1.msra.mxu0 %v67
  %85 = vmatprep.subr.mxu0 0.0
  %86 = vmatpush1.msra.mxu0 %v68
  %87 = vmatprep.subr.mxu0 0.0
  %88 = vmatpush1.msra.mxu0 %v69
  %89 = vmatprep.subr.mxu0 0.0
  %90 = vmatpush1.msra.mxu0 %v70
  %91 = vmatprep.subr.mxu0 0.0
  %92 = vmatpush1.msra.mxu0 %v71
  %93 = vmatprep.subr.mxu0 0.0
  %94 = vmatpush1.msra.mxu0 %v72
  %95 = vmatprep.subr.mxu0 0.0
  %96 = vmatpush1.msra.mxu0 0.0
  %97 = vmatprep.subr.mxu0 0.0
  %98 = vmatpush1.msra.mxu0 0.0
  %99 = vmatprep.subr.mxu0 0.0
  %100 = vmatpush1.msra.mxu0 0.0
  %101 = vmatprep.subr.mxu0 0.0
  %102 = vmatpush1.msra.mxu0 0.0
  %103 = vmatprep.subr.mxu0 0.0
  %104 = vmatpush1.msra.mxu0 0.0
  %105 = vmatprep.subr.mxu0 0.0
  %106 = vmatpush1.msra.mxu0 0.0
  %107 = vmatprep.subr.mxu0 0.0
  %108 = vmatpush1.msra.mxu0 0.0
  %109 = vmatprep.subr.mxu0 0.0
  %110 = vmatpush1.msra.mxu0 0.0
  %111 = vmatprep.subr.mxu0 0.0
  %112 = vmatpush1.msra.mxu0 0.0
  %113 = vmatprep.subr.mxu0 0.0
  %114 = vmatpush1.msra.mxu0 0.0
  %115 = vmatprep.subr.mxu0 0.0
  %116 = vmatpush1.msra.mxu0 0.0
  %117 = vmatprep.subr.mxu0 0.0
  %118 = vmatpush1.msra.mxu0 0.0
  %119 = vmatprep.subr.mxu0 0.0
  %120 = vmatpush1.msra.mxu0 0.0
  %121 = vmatprep.subr.mxu0 0.0
  %122 = vmatpush1.msra.mxu0 0.0
  %123 = vmatprep.subr.mxu0 0.0
  %124 = vmatpush1.msra.mxu0 0.0
  %125 = vmatprep.subr.mxu0 0.0
  %126 = vmatpush1.msra.mxu0 0.0
  %127 = vmatprep.subr.mxu0 0.0
  %128 = vmatpush1.msra.mxu0 0.0
  %129 = vmatprep.subr.mxu0 0.0
  %130 = vmatpush1.msra.mxu0 0.0
  %131 = vmatprep.subr.mxu0 0.0
  %132 = vmatpush1.msra.mxu0 0.0
  %133 = vmatprep.subr.mxu0 0.0
  %134 = vmatpush1.msra.mxu0 0.0
  %135 = vmatprep.subr.mxu0 0.0
  %136 = vmatpush1.msra.mxu0 0.0
  %137 = vmatprep.subr.mxu0 0.0
  %138 = vmatpush1.msra.mxu0 0.0
  %139 = vmatprep.subr.mxu0 0.0
  %140 = vmatpush1.msra.mxu0 0.0
  %141 = vmatprep.subr.mxu0 0.0
  %142 = vmatpush1.msra.mxu0 0.0
  %143 = vmatprep.mubr.f32.mxu0 0.0
  %144 = vmatmul.mubr.f32.gmra.mrb[0].mxu0 %v74
  %v145 = vpop.f32.mrb[0].mxu0
  %v146 = vadd.f32 0.0, %v145
  %v147 = vpop.f32.mrb[0].mxu0
  %148 = vmatprep.mubr.f32.mxu0 0.0
  %149 = vmatmul.mubr.f32.gmra.mrb[0].mxu0 %v77
  %v150 = vpop.f32.mrb[0].mxu0
  %v151 = vadd.f32 0.0, %v150
  %v152 = vpop.f32.mrb[0].mxu0
  %153 = vdwg.mxu0
  %vm154 = vcmask 31744
  %155 = vst.msk [vmem:[%s4] sm:$0xff] %vm154, %v146
  %156 = vst.msk [vmem:[%s4 + $0x8] sm:$0xff] %vm154, %v151
  // Predicated region
  $region18: #{gpt_forward.7} parent=0 // pred_check
    _
  $region19: #{gpt_forward.7} parent=0 // pred_check_branch
    %158 = sbr.rel (0) target = $region21
  $region20: #{gpt_forward.7} parent=0 // pred_region
    _
  $region21: #{gpt_forward.7} parent=0 // pred_fallthru
    _
  // Predicated region
  $region22: #{gpt_forward.7} parent=0 // pred_check
    _
  $region23: #{gpt_forward.7} parent=0 // pred_check_branch
    %160 = sbr.rel (0) target = $region25
  $region24: #{gpt_forward.7} parent=0 // pred_region
    _
  $region25: #{gpt_forward.7} parent=0 // pred_fallthru
    _

// kernel: gpt_forward.5
$region0: #{gpt_forward.5}
  #allocation0 [shape = 'u32[]', space=smem, size = 0x4, offset = 0x4, fixed_abs, tag = 'smem constant byte address 0x4 - core index']
  #allocation1 [shape = 'u32[144,128]{1,0:T(1,128)}', space=vmem, size = 0x12000, scoped, tag = 'internal scratch']
  %s0 = inlined_call_operand.vmem [shape: f32[2,8,64], index: 0, kind: input, shape index: {}]
  %s1 = inlined_call_operand.vmem [shape: f32[1,64], index: 1, kind: input, shape index: {}]
  %s2 = inlined_call_operand.vmem [shape: f32[1,64], index: 2, kind: input, shape index: {}]
  %s3 = inlined_call_operand.vmem [shape: f32[64,192], index: 3, kind: input, shape index: {}]
  %s4 = inlined_call_operand.vmem [shape: f32[1,192], index: 4, kind: input, shape index: {}]
  %s5 = inlined_call_operand.vmem [shape: f32[64,64], index: 5, kind: input, shape index: {}]
  %s6 = inlined_call_operand.vmem [shape: f32[1,64], index: 6, kind: input, shape index: {}]
  %s7 = inlined_call_operand.vmem [shape: f32[1,64], index: 7, kind: input, shape index: {}]
  %s8 = inlined_call_operand.vmem [shape: f32[1,64], index: 8, kind: input, shape index: {}]
  %s9 = inlined_call_operand.vmem [shape: f32[64,256], index: 9, kind: input, shape index: {}]
  %s10 = inlined_call_operand.vmem [shape: f32[1,256], index: 10, kind: input, shape index: {}]
  %s11 = inlined_call_operand.vmem [shape: f32[256,64], index: 11, kind: input, shape index: {}]
  %s12 = inlined_call_operand.vmem [shape: f32[1,64], index: 12, kind: input, shape index: {}]
  %s13 = inlined_call_operand.vmem [shape: f32[2,8,64], index: 13, kind: output, shape index: {}]
  %s14 = sld [smem:[#allocation0]]
  $region85: #{gpt_forward.5} parent=0
    _
  %s16 = ssub.s32 1, %s14
  %s17 = scalar_select 0, %s16, %s14
  loop: start=0, step=1, limit=4
  $region2: #{gpt_forward.5} parent=0 // loop_pre_header
    _
  $region3: #{gpt_forward.5} parent=0 // loop_header
    %s19 = sphi 0, %s23
    %p20 = scmp.ge.s32.totalorder %s19, 4
    %s29 = sphi 0, %s31
    %s32 = sphi 0, %s29
    %s33 = sphi 0, %s32
    %s49 = sphi 0, %s33
    %s53 = sphi 0, %s53
    %s55 = sphi 0, %s53
    %s56 = sphi 0, %s55
    %s70 = sphi 0, %s56
    %s74 = sphi 0, %s74
    %s76 = sphi 0, %s74
    %s77 = sphi 0, %s76
    %s91 = sphi 0, %s77
    %s95 = sphi 0, %s95
    %s97 = sphi 0, %s95
    %s98 = sphi 0, %s97
    %s112 = sphi 0, %s98
    %s116 = sphi 0, %s116
    %s118 = sphi 0, %s116
    %s119 = sphi 0, %s118
    %s133 = sphi 0, %s119
    %s137 = sphi 0, %s137
    %s139 = sphi 0, %s137
    %s140 = sphi 0, %s139
    %s154 = sphi 0, %s140
    %s158 = sphi 0, %s158
    %s160 = sphi 0, %s158
    %s161 = sphi 0, %s160
    %s175 = sphi 0, %s161
    %s179 = sphi 0, %s179
    %s181 = sphi 0, %s179
    %s182 = sphi 0, %s181
    %s196 = sphi 0, %s182
    %s200 = sphi 0, %s200
    %s202 = sphi 0, %s200
    %s203 = sphi 0, %s202
    %s217 = sphi 0, %s203
    %s221 = sphi 0, %s221
    %s223 = sphi 0, %s221
    %s224 = sphi 0, %s223
    %s238 = sphi 0, %s224
    %s242 = sphi 0, %s242
    %s244 = sphi 0, %s242
    %s245 = sphi 0, %s244
    %s259 = sphi 0, %s245
    %s263 = sphi 0, %s263
    %s265 = sphi 0, %s263
    %s266 = sphi 0, %s265
    %s280 = sphi 0, %s266
    %s284 = sphi 0, %s284
    %s286 = sphi 0, %s284
    %s287 = sphi 0, %s286
    %s301 = sphi 0, %s287
    %s307 = sphi 0, %s309
    %s310 = sphi 0, %s307
    %s311 = sphi 0, %s310
    %s327 = sphi 0, %s311
  $region4: #{gpt_forward.5} parent=0 // loop_header_branch
    %22 = sbr.rel (%p20) target = $region8
  $region5: #{gpt_forward.5} parent=0 // loop_body
    %s24 = ssub.s32 %s19, 1
    %s25 = ssub.s32 %s19, 2
    %s26 = sadd.s32 %s19, 1
    %s27 = ssub.s32 %s19, %s26
    %p28 = scmp.eq.s32.totalorder %s27, 0
    %s30 = sadd.s32 %s29, 1
    %s31 = scalar_select %p28, %s29, %s30
    %p34 = pneg %p28
    %p35 = scmp.eq.s32.totalorder %s19, 1
    %p36 = por %p34, %p35
    %p37 = scmp.ne.s32.totalorder %s29, %s32
    %p38 = scmp.eq.s32.totalorder %s19, 0
    %p39 = por %p37, %p38
    %p40 = scmp.ne.s32.totalorder %s29, %s32
    %p41 = scmp.eq.s32.totalorder %s24, 1
    %p42 = por %p40, %p41
    %p43 = scmp.ne.s32.totalorder %s32, %s33
    %p44 = scmp.eq.s32.totalorder %s24, 0
    %p45 = por %p43, %p44
    %p46 = scmp.ne.s32.totalorder %s32, %s33
    %p47 = scmp.eq.s32.totalorder %s25, 1
    %p48 = por %p46, %p47
    %p50 = scmp.ne.s32.totalorder %s33, %s49
    %p51 = scmp.eq.s32.totalorder %s25, 0
    %p52 = por %p50, %p51
    %s54 = sadd.s32 %s53, 1
    %p57 = scmp.eq.s32.totalorder %s19, 1
    %p58 = scmp.ne.s32.totalorder %s53, %s55
    %p59 = scmp.eq.s32.totalorder %s19, 0
    %p60 = por %p58, %p59
    %p61 = scmp.ne.s32.totalorder %s53, %s55
    %p62 = scmp.eq.s32.totalorder %s24, 1
    %p63 = por %p61, %p62
    %p64 = scmp.ne.s32.totalorder %s55, %s56
    %p65 = scmp.eq.s32.totalorder %s24, 0
    %p66 = por %p64, %p65
    %p67 = scmp.ne.s32.totalorder %s55, %s56
    %p68 = scmp.eq.s32.totalorder %s25, 1
    %p69 = por %p67, %p68
    %p71 = scmp.ne.s32.totalorder %s56, %s70
    %p72 = scmp.eq.s32.totalorder %s25, 0
    %p73 = por %p71, %p72
    %s75 = sadd.s32 %s74, 1
    %p78 = scmp.eq.s32.totalorder %s19, 1
    %p79 = scmp.ne.s32.totalorder %s74, %s76
    %p80 = scmp.eq.s32.totalorder %s19, 0
    %p81 = por %p79, %p80
    %p82 = scmp.ne.s32.totalorder %s74, %s76
    %p83 = scmp.eq.s32.totalorder %s24, 1
    %p84 = por %p82, %p83
    %p85 = scmp.ne.s32.totalorder %s76, %s77
    %p86 = scmp.eq.s32.totalorder %s24, 0
    %p87 = por %p85, %p86
    %p88 = scmp.ne.s32.totalorder %s76, %s77
    %p89 = scmp.eq.s32.totalorder %s25, 1
    %p90 = por %p88, %p89
    %p92 = scmp.ne.s32.totalorder %s77, %s91
    %p93 = scmp.eq.s32.totalorder %s25, 0
    %p94 = por %p92, %p93
    %s96 = sadd.s32 %s95, 1
    %p99 = scmp.eq.s32.totalorder %s19, 1
    %p100 = scmp.ne.s32.totalorder %s95, %s97
    %p101 = scmp.eq.s32.totalorder %s19, 0
    %p102 = por %p100, %p101
    %p103 = scmp.ne.s32.totalorder %s95, %s97
    %p104 = scmp.eq.s32.totalorder %s24, 1
    %p105 = por %p103, %p104
    %p106 = scmp.ne.s32.totalorder %s97, %s98
    %p107 = scmp.eq.s32.totalorder %s24, 0
    %p108 = por %p106, %p107
    %p109 = scmp.ne.s32.totalorder %s97, %s98
    %p110 = scmp.eq.s32.totalorder %s25, 1
    %p111 = por %p109, %p110
    %p113 = scmp.ne.s32.totalorder %s98, %s112
    %p114 = scmp.eq.s32.totalorder %s25, 0
    %p115 = por %p113, %p114
    %s117 = sadd.s32 %s116, 1
    %p120 = scmp.eq.s32.totalorder %s19, 1
    %p121 = scmp.ne.s32.totalorder %s116, %s118
    %p122 = scmp.eq.s32.totalorder %s19, 0
    %p123 = por %p121, %p122
    %p124 = scmp.ne.s32.totalorder %s116, %s118
    %p125 = scmp.eq.s32.totalorder %s24, 1
    %p126 = por %p124, %p125
    %p127 = scmp.ne.s32.totalorder %s118, %s119
    %p128 = scmp.eq.s32.totalorder %s24, 0
    %p129 = por %p127, %p128
    %p130 = scmp.ne.s32.totalorder %s118, %s119
    %p131 = scmp.eq.s32.totalorder %s25, 1
    %p132 = por %p130, %p131
    %p134 = scmp.ne.s32.totalorder %s119, %s133
    %p135 = scmp.eq.s32.totalorder %s25, 0
    %p136 = por %p134, %p135
    %s138 = sadd.s32 %s137, 1
    %p141 = scmp.eq.s32.totalorder %s19, 1
    %p142 = scmp.ne.s32.totalorder %s137, %s139
    %p143 = scmp.eq.s32.totalorder %s19, 0
    %p144 = por %p142, %p143
    %p145 = scmp.ne.s32.totalorder %s137, %s139
    %p146 = scmp.eq.s32.totalorder %s24, 1
    %p147 = por %p145, %p146
    %p148 = scmp.ne.s32.totalorder %s139, %s140
    %p149 = scmp.eq.s32.totalorder %s24, 0
    %p150 = por %p148, %p149
    %p151 = scmp.ne.s32.totalorder %s139, %s140
    %p152 = scmp.eq.s32.totalorder %s25, 1
    %p153 = por %p151, %p152
    %p155 = scmp.ne.s32.totalorder %s140, %s154
    %p156 = scmp.eq.s32.totalorder %s25, 0
    %p157 = por %p155, %p156
    %s159 = sadd.s32 %s158, 1
    %p162 = scmp.eq.s32.totalorder %s19, 1
    %p163 = scmp.ne.s32.totalorder %s158, %s160
    %p164 = scmp.eq.s32.totalorder %s19, 0
    %p165 = por %p163, %p164
    %p166 = scmp.ne.s32.totalorder %s158, %s160
    %p167 = scmp.eq.s32.totalorder %s24, 1
    %p168 = por %p166, %p167
    %p169 = scmp.ne.s32.totalorder %s160, %s161
    %p170 = scmp.eq.s32.totalorder %s24, 0
    %p171 = por %p169, %p170
    %p172 = scmp.ne.s32.totalorder %s160, %s161
    %p173 = scmp.eq.s32.totalorder %s25, 1
    %p174 = por %p172, %p173
    %p176 = scmp.ne.s32.totalorder %s161, %s175
    %p177 = scmp.eq.s32.totalorder %s25, 0
    %p178 = por %p176, %p177
    %s180 = sadd.s32 %s179, 1
    %p183 = scmp.eq.s32.totalorder %s19, 1
    %p184 = scmp.ne.s32.totalorder %s179, %s181
    %p185 = scmp.eq.s32.totalorder %s19, 0
    %p186 = por %p184, %p185
    %p187 = scmp.ne.s32.totalorder %s179, %s181
    %p188 = scmp.eq.s32.totalorder %s24, 1
    %p189 = por %p187, %p188
    %p190 = scmp.ne.s32.totalorder %s181, %s182
    %p191 = scmp.eq.s32.totalorder %s24, 0
    %p192 = por %p190, %p191
    %p193 = scmp.ne.s32.totalorder %s181, %s182
    %p194 = scmp.eq.s32.totalorder %s25, 1
    %p195 = por %p193, %p194
    %p197 = scmp.ne.s32.totalorder %s182, %s196
    %p198 = scmp.eq.s32.totalorder %s25, 0
    %p199 = por %p197, %p198
    %s201 = sadd.s32 %s200, 1
    %p204 = scmp.eq.s32.totalorder %s19, 1
    %p205 = scmp.ne.s32.totalorder %s200, %s202
    %p206 = scmp.eq.s32.totalorder %s19, 0
    %p207 = por %p205, %p206
    %p208 = scmp.ne.s32.totalorder %s200, %s202
    %p209 = scmp.eq.s32.totalorder %s24, 1
    %p210 = por %p208, %p209
    %p211 = scmp.ne.s32.totalorder %s202, %s203
    %p212 = scmp.eq.s32.totalorder %s24, 0
    %p213 = por %p211, %p212
    %p214 = scmp.ne.s32.totalorder %s202, %s203
    %p215 = scmp.eq.s32.totalorder %s25, 1
    %p216 = por %p214, %p215
    %p218 = scmp.ne.s32.totalorder %s203, %s217
    %p219 = scmp.eq.s32.totalorder %s25, 0
    %p220 = por %p218, %p219
    %s222 = sadd.s32 %s221, 1
    %p225 = scmp.eq.s32.totalorder %s19, 1
    %p226 = scmp.ne.s32.totalorder %s221, %s223
    %p227 = scmp.eq.s32.totalorder %s19, 0
    %p228 = por %p226, %p227
    %p229 = scmp.ne.s32.totalorder %s221, %s223
    %p230 = scmp.eq.s32.totalorder %s24, 1
    %p231 = por %p229, %p230
    %p232 = scmp.ne.s32.totalorder %s223, %s224
    %p233 = scmp.eq.s32.totalorder %s24, 0
    %p234 = por %p232, %p233
    %p235 = scmp.ne.s32.totalorder %s223, %s224
    %p236 = scmp.eq.s32.totalorder %s25, 1
    %p237 = por %p235, %p236
    %p239 = scmp.ne.s32.totalorder %s224, %s238
    %p240 = scmp.eq.s32.totalorder %s25, 0
    %p241 = por %p239, %p240
    %s243 = sadd.s32 %s242, 1
    %p246 = scmp.eq.s32.totalorder %s19, 1
    %p247 = scmp.ne.s32.totalorder %s242, %s244
    %p248 = scmp.eq.s32.totalorder %s19, 0
    %p249 = por %p247, %p248
    %p250 = scmp.ne.s32.totalorder %s242, %s244
    %p251 = scmp.eq.s32.totalorder %s24, 1
    %p252 = por %p250, %p251
    %p253 = scmp.ne.s32.totalorder %s244, %s245
    %p254 = scmp.eq.s32.totalorder %s24, 0
    %p255 = por %p253, %p254
    %p256 = scmp.ne.s32.totalorder %s244, %s245
    %p257 = scmp.eq.s32.totalorder %s25, 1
    %p258 = por %p256, %p257
    %p260 = scmp.ne.s32.totalorder %s245, %s259
    %p261 = scmp.eq.s32.totalorder %s25, 0
    %p262 = por %p260, %p261
    %s264 = sadd.s32 %s263, 1
    %p267 = scmp.eq.s32.totalorder %s19, 1
    %p268 = scmp.ne.s32.totalorder %s263, %s265
    %p269 = scmp.eq.s32.totalorder %s19, 0
    %p270 = por %p268, %p269
    %p271 = scmp.ne.s32.totalorder %s263, %s265
    %p272 = scmp.eq.s32.totalorder %s24, 1
    %p273 = por %p271, %p272
    %p274 = scmp.ne.s32.totalorder %s265, %s266
    %p275 = scmp.eq.s32.totalorder %s24, 0
    %p276 = por %p274, %p275
    %p277 = scmp.ne.s32.totalorder %s265, %s266
    %p278 = scmp.eq.s32.totalorder %s25, 1
    %p279 = por %p277, %p278
    %p281 = scmp.ne.s32.totalorder %s266, %s280
    %p282 = scmp.eq.s32.totalorder %s25, 0
    %p283 = por %p281, %p282
    %s285 = sadd.s32 %s284, 1
    %p288 = scmp.eq.s32.totalorder %s19, 1
    %p289 = scmp.ne.s32.totalorder %s284, %s286
    %p290 = scmp.eq.s32.totalorder %s19, 0
    %p291 = por %p289, %p290
    %p292 = scmp.ne.s32.totalorder %s284, %s286
    %p293 = scmp.eq.s32.totalorder %s24, 1
    %p294 = por %p292, %p293
    %p295 = scmp.ne.s32.totalorder %s286, %s287
    %p296 = scmp.eq.s32.totalorder %s24, 0
    %p297 = por %p295, %p296
    %p298 = scmp.ne.s32.totalorder %s286, %s287
    %p299 = scmp.eq.s32.totalorder %s25, 1
    %p300 = por %p298, %p299
    %p302 = scmp.ne.s32.totalorder %s287, %s301
    %p303 = scmp.eq.s32.totalorder %s25, 0
    %p304 = por %p302, %p303
    %s305 = ssub.s32 %s19, %s26
    %p306 = scmp.eq.s32.totalorder %s305, 0
    %s308 = sadd.s32 %s307, 1
    %s309 = scalar_select %p306, %s307, %s308
    %p312 = pneg %p306
    %p313 = scmp.eq.s32.totalorder %s19, 1
    %p314 = por %p312, %p313
    %p315 = scmp.ne.s32.totalorder %s307, %s310
    %p316 = scmp.eq.s32.totalorder %s19, 0
    %p317 = por %p315, %p316
    %p318 = scmp.ne.s32.totalorder %s307, %s310
    %p319 = scmp.eq.s32.totalorder %s24, 1
    %p320 = por %p318, %p319
    %p321 = scmp.ne.s32.totalorder %s310, %s311
    %p322 = scmp.eq.s32.totalorder %s24, 0
    %p323 = por %p321, %p322
    %p324 = scmp.ne.s32.totalorder %s310, %s311
    %p325 = scmp.eq.s32.totalorder %s25, 1
    %p326 = por %p324, %p325
    %p328 = scmp.ne.s32.totalorder %s311, %s327
    %p329 = scmp.eq.s32.totalorder %s25, 0
    %p330 = por %p328, %p329
    %p331 = scmp.le.s32.totalorder 1, %s19
    %p332 = scmp.lt.s32.totalorder %s19, 3
    %p333 = pnand %p331, %p332
    %p334 = pneg %p333
    // Predicated region
    $region9: #{gpt_forward.5} parent=5 // pred_check
      _
    $region10: #{gpt_forward.5} parent=5 // pred_check_branch
      %336 = sbr.rel (%p333) target = $region12
    $region11: #{gpt_forward.5} parent=5 // pred_region
      %s337 = ssub.s32 %s19, 1
      // Predicated region
      $region13: #{gpt_forward.5} parent=11 // pred_check
        %p338 = pneg %p66
      $region14: #{gpt_forward.5} parent=11 // pred_check_branch
        %340 = sbr.rel (%p338) target = $region16
      $region15: #{gpt_forward.5} parent=11 // pred_region
        _
      $region16: #{gpt_forward.5} parent=11 // pred_fallthru
        _
      // Predicated region
      $region17: #{gpt_forward.5} parent=11 // pred_check
        %p341 = pneg %p87
      $region18: #{gpt_forward.5} parent=11 // pred_check_branch
        %343 = sbr.rel (%p341) target = $region20
      $region19: #{gpt_forward.5} parent=11 // pred_region
        _
      $region20: #{gpt_forward.5} parent=11 // pred_fallthru
        _
      // Predicated region
      $region21: #{gpt_forward.5} parent=11 // pred_check
        %p344 = pneg %p108
      $region22: #{gpt_forward.5} parent=11 // pred_check_branch
        %346 = sbr.rel (%p344) target = $region24
      $region23: #{gpt_forward.5} parent=11 // pred_region
        _
      $region24: #{gpt_forward.5} parent=11 // pred_fallthru
        _
      // Predicated region
      $region25: #{gpt_forward.5} parent=11 // pred_check
        %p347 = pneg %p129
      $region26: #{gpt_forward.5} parent=11 // pred_check_branch
        %349 = sbr.rel (%p347) target = $region28
      $region27: #{gpt_forward.5} parent=11 // pred_region
        _
      $region28: #{gpt_forward.5} parent=11 // pred_fallthru
        _
      // Predicated region
      $region29: #{gpt_forward.5} parent=11 // pred_check
        %p350 = pneg %p150
      $region30: #{gpt_forward.5} parent=11 // pred_check_branch
        %352 = sbr.rel (%p350) target = $region32
      $region31: #{gpt_forward.5} parent=11 // pred_region
        _
      $region32: #{gpt_forward.5} parent=11 // pred_fallthru
        _
      // Predicated region
      $region33: #{gpt_forward.5} parent=11 // pred_check
        %p353 = pneg %p171
      $region34: #{gpt_forward.5} parent=11 // pred_check_branch
        %355 = sbr.rel (%p353) target = $region36
      $region35: #{gpt_forward.5} parent=11 // pred_region
        _
      $region36: #{gpt_forward.5} parent=11 // pred_fallthru
        _
      // Predicated region
      $region37: #{gpt_forward.5} parent=11 // pred_check
        %p356 = pneg %p192
      $region38: #{gpt_forward.5} parent=11 // pred_check_branch
        %358 = sbr.rel (%p356) target = $region40
      $region39: #{gpt_forward.5} parent=11 // pred_region
        _
      $region40: #{gpt_forward.5} parent=11 // pred_fallthru
        _
      // Predicated region
      $region41: #{gpt_forward.5} parent=11 // pred_check
        %p359 = pneg %p213
      $region42: #{gpt_forward.5} parent=11 // pred_check_branch
        %361 = sbr.rel (%p359) target = $region44
      $region43: #{gpt_forward.5} parent=11 // pred_region
        _
      $region44: #{gpt_forward.5} parent=11 // pred_fallthru
        _
      // Predicated region
      $region45: #{gpt_forward.5} parent=11 // pred_check
        %p362 = pneg %p234
      $region46: #{gpt_forward.5} parent=11 // pred_check_branch
        %364 = sbr.rel (%p362) target = $region48
      $region47: #{gpt_forward.5} parent=11 // pred_region
        _
      $region48: #{gpt_forward.5} parent=11 // pred_fallthru
        _
      // Predicated region
      $region49: #{gpt_forward.5} parent=11 // pred_check
        %p365 = pneg %p255
      $region50: #{gpt_forward.5} parent=11 // pred_check_branch
        %367 = sbr.rel (%p365) target = $region52
      $region51: #{gpt_forward.5} parent=11 // pred_region
        _
      $region52: #{gpt_forward.5} parent=11 // pred_fallthru
        _
      // Predicated region
      $region53: #{gpt_forward.5} parent=11 // pred_check
        %p368 = pneg %p276
      $region54: #{gpt_forward.5} parent=11 // pred_check_branch
        %370 = sbr.rel (%p368) target = $region56
      $region55: #{gpt_forward.5} parent=11 // pred_region
        _
      $region56: #{gpt_forward.5} parent=11 // pred_fallthru
        _
      // Predicated region
      $region57: #{gpt_forward.5} parent=11 // pred_check
        %p371 = pneg %p297
      $region58: #{gpt_forward.5} parent=11 // pred_check_branch
        %373 = sbr.rel (%p371) target = $region60
      $region59: #{gpt_forward.5} parent=11 // pred_region
        _
      $region60: #{gpt_forward.5} parent=11 // pred_fallthru
        _
    $region12: #{gpt_forward.5} parent=5 // pred_fallthru
      _
    %p374 = scmp.lt.s32.totalorder %s19, 2
    // Predicated region
    $region61: #{gpt_forward.5} parent=5 // pred_check
      %p375 = pneg %p374
    $region62: #{gpt_forward.5} parent=5 // pred_check_branch
      %377 = sbr.rel (%p375) target = $region64
    $region63: #{gpt_forward.5} parent=5 // pred_region
      // Predicated region
      $region65: #{gpt_forward.5} parent=63 // pred_check
        %p378 = pneg %p39
      $region66: #{gpt_forward.5} parent=63 // pred_check_branch
        %380 = sbr.rel (%p378) target = $region68
      $region67: #{gpt_forward.5} parent=63 // pred_region
        %p381 = scmp.lt.s32.totalorder %s19, 1
        %s382 = scalar_select %p381, %s19, 1
        %s383 = smul.addr %s382, 8
        %s384 = scalar_lea.vmem %s0, %s383
      $region68: #{gpt_forward.5} parent=63 // pred_fallthru
        _
    $region64: #{gpt_forward.5} parent=5 // pred_fallthru
      _
    %p385 = scmp.le.s32.totalorder 1, %s19
    %p386 = scmp.lt.s32.totalorder %s19, 3
    %p387 = pnand %p385, %p386
    %p388 = pneg %p387
    // Predicated region
    $region69: #{gpt_forward.5} parent=5 // pred_check
      _
    $region70: #{gpt_forward.5} parent=5 // pred_check_branch
      %390 = sbr.rel (%p387) target = $region72
    $region71: #{gpt_forward.5} parent=5 // pred_region
      %s391 = ssub.s32 %s19, 1
      %p392 = scmp.lt.s32.totalorder %s24, 1
      %s393 = scalar_select %p392, %s24, 1
      %s394 = smul.addr %s393, 8
      %s395 = scalar_lea.vmem %s0, %s394
      %p396 = pneg %p45
      %p397 = pneg %p42
      %p398 = pneg %p66
      %p399 = pneg %p63
      %p400 = pneg %p87
      %p401 = pneg %p84
      %p402 = pneg %p108
      %p403 = pneg %p105
      %p404 = pneg %p129
      %p405 = pneg %p126
      %p406 = pneg %p150
      %p407 = pneg %p147
      %p408 = pneg %p171
      %p409 = pneg %p168
      %p410 = pneg %p192
      %p411 = pneg %p189
      %p412 = pneg %p213
      %p413 = pneg %p210
      %p414 = pneg %p234
      %p415 = pneg %p231
      %p416 = pneg %p255
      %p417 = pneg %p252
      %p418 = pneg %p276
      %p419 = pneg %p273
      %p420 = pneg %p297
      %p421 = pneg %p294
      %p422 = pneg %p323
      %p423 = pneg %p320
      %p424 = scmp.lt.s32.totalorder %s24, 1
      %s425 = scalar_select %p424, %s24, 1
      %s426 = smul.addr %s425, 8
      %s427 = scalar_lea.vmem %s13, %s426
      %p428 = scmp.lt.s32.totalorder %s24, 1
      %s429 = scalar_select %p428, %s24, 1
      %s430 = smul.addr %s429, 8
      %s431 = scalar_lea.vmem %s0, %s430
      %p432 = scmp.lt.s32.totalorder %s24, 1
      %s433 = scalar_select %p432, %s24, 1
      %s434 = smul.addr %s433, 8
      %s435 = scalar_lea.vmem %s13, %s434
      %v436 = vld [vmem:[%s431] sm:$0xff]
      %v437 = vld [vmem:[%s1] sm:$0x1]
      %v438 = vld [vmem:[%s2] sm:$0x1]
      %vm439 = vcmask 523264
      %v440 = vsel %vm439, %v436, 0.0
      %441 = vadd.xlane.f32.xlu0 %v440
      %v442 = vpop.xlane.xlu0 %441
      %v443 = vrcp.pop 64.0
      %v444 = vmul.f32 %v442, %v443
      %v445 = vsub.f32 %v436, %v444
      %v446 = vmul.f32 %v445, %v445
      %v447 = vsel %vm439, %v446, 0.0
      %448 = vadd.xlane.f32.xlu0 %v447
      %v449 = vpop.xlane.xlu0 %448
      %v450 = vmul.f32 %v449, %v443
      %v451 = vadd.f32 %v450, 1e-05
      %v452 = vrsqrt.pop %v451
      %v453 = vmul.f32 %v445, %v452
      %v455 = vlaneseq
      %v456 = vshrl.u32 %v455, 7
      %v457 = vsub.s32 0, %v456
      %v458 = vrot.slane %v437, %v457
      %v460 = vmul.f32 %v453, %v458
      %v462 = vlaneseq
      %v463 = vshrl.u32 %v462, 7
      %v464 = vsub.s32 0, %v463
      %v465 = vrot.slane %v438, %v464
      %v467 = vadd.f32 %v460, %v465
      %v468 = vld [vmem:[%s3] sm:$0xff]
      %v469 = vld [vmem:[%s3 + $0x8] sm:$0xff]
      %v470 = vld [vmem:[%s3 + $0x10] sm:$0xff]
      %v471 = vld [vmem:[%s3 + $0x18] sm:$0xff]
      %v472 = vld [vmem:[%s3 + $0x20] sm:$0xff]
      %v473 = vld [vmem:[%s3 + $0x28] sm:$0xff]
      %v474 = vld [vmem:[%s3 + $0x30] sm:$0xff]
      %v475 = vld [vmem:[%s3 + $0x38] sm:$0xff]
      %v476 = vld [vmem:[%s3 + $0x40] sm:$0xff]
      %v477 = vld [vmem:[%s3 + $0x48] sm:$0xff]
      %v478 = vld [vmem:[%s3 + $0x50] sm:$0xff]
      %v479 = vld [vmem:[%s3 + $0x58] sm:$0xff]
      %v480 = vld [vmem:[%s3 + $0x60] sm:$0xff]
      %v481 = vld [vmem:[%s3 + $0x68] sm:$0xff]
      %v482 = vld [vmem:[%s3 + $0x70] sm:$0xff]
      %v483 = vld [vmem:[%s3 + $0x78] sm:$0xff]
      %v484 = vld [vmem:[%s4] sm:$0x3]
      %v486 = vlaneseq
      %v487 = vshrl.u32 %v486, 7
      %v488 = vsub.s32 0, %v487
      %v489 = vrot.slane %v484, %v488
      %v490 = vlaneseq
      %v491 = vshrl.u32 %v490, 7
      %v492 = vsub.s32 1, %v491
      %v493 = vrot.slane %v484, %v492
      %v497 = vsel %vm439, %v467, 0
      %499 = vmatprep.subr.mxu0 %v469
      %500 = vmatpush1.msra.mxu0 %v468
      %501 = vmatprep.subr.mxu0 %v471
      %502 = vmatpush1.msra.mxu0 %v470
      %503 = vmatprep.subr.mxu0 %v473
      %504 = vmatpush1.msra.mxu0 %v472
      %505 = vmatprep.subr.mxu0 %v475
      %506 = vmatpush1.msra.mxu0 %v474
      %507 = vmatprep.subr.mxu0 %v477
      %508 = vmatpush1.msra.mxu0 %v476
      %509 = vmatprep.subr.mxu0 %v479
      %510 = vmatpush1.msra.mxu0 %v478
      %511 = vmatprep.subr.mxu0 %v481
      %512 = vmatpush1.msra.mxu0 %v480
      %513 = vmatprep.subr.mxu0 %v483
      %514 = vmatpush1.msra.mxu0 %v482
      %515 = vmatprep.subr.mxu0 0.0
      %516 = vmatpush1.msra.mxu0 0.0
      %517 = vmatprep.subr.mxu0 0.0
      %518 = vmatpush1.msra.mxu0 0.0
      %519 = vmatprep.subr.mxu0 0.0
      %520 = vmatpush1.msra.mxu0 0.0
      %521 = vmatprep.subr.mxu0 0.0
      %522 = vmatpush1.msra.mxu0 0.0
      %523 = vmatprep.subr.mxu0 0.0
      %524 = vmatpush1.msra.mxu0 0.0
      %525 = vmatprep.subr.mxu0 0.0
      %526 = vmatpush1.msra.mxu0 0.0
      %527 = vmatprep.subr.mxu0 0.0
      %528 = vmatpush1.msra.mxu0 0.0
      %529 = vmatprep.subr.mxu0 0.0
      %530 = vmatpush1.msra.mxu0 0.0
      %531 = vmatprep.subr.mxu0 0.0
      %532 = vmatpush1.msra.mxu0 0.0
      %533 = vmatprep.subr.mxu0 0.0
      %534 = vmatpush1.msra.mxu0 0.0
      %535 = vmatprep.subr.mxu0 0.0
      %536 = vmatpush1.msra.mxu0 0.0
      %537 = vmatprep.subr.mxu0 0.0
      %538 = vmatpush1.msra.mxu0 0.0
      %539 = vmatprep.subr.mxu0 0.0
      %540 = vmatpush1.msra.mxu0 0.0
      %541 = vmatprep.subr.mxu0 0.0
      %542 = vmatpush1.msra.mxu0 0.0
      %543 = vmatprep.subr.mxu0 0.0
      %544 = vmatpush1.msra.mxu0 0.0
      %545 = vmatprep.subr.mxu0 0.0
      %546 = vmatpush1.msra.mxu0 0.0
      %547 = vmatprep.subr.mxu0 0.0
      %548 = vmatpush1.msra.mxu0 0.0
      %549 = vmatprep.subr.mxu0 0.0
      %550 = vmatpush1.msra.mxu0 0.0
      %551 = vmatprep.subr.mxu0 0.0
      %552 = vmatpush1.msra.mxu0 0.0
      %553 = vmatprep.subr.mxu0 0.0
      %554 = vmatpush1.msra.mxu0 0.0
      %555 = vmatprep.subr.mxu0 0.0
      %556 = vmatpush1.msra.mxu0 0.0
      %557 = vmatprep.subr.mxu0 0.0
      %558 = vmatpush1.msra.mxu0 0.0
      %559 = vmatprep.subr.mxu0 0.0
      %560 = vmatpush1.msra.mxu0 0.0
      %561 = vmatprep.subr.mxu0 0.0
      %562 = vmatpush1.msra.mxu0 0.0
      %563 = vmatprep.mubr.f32.mxu0 0.0
      %564 = vmatmul.mubr.f32.gmra.mrb[0].mxu0 %v497
      %v565 = vpop.f32.mrb[0].mxu0
      %v566 = vadd.f32 %v489, %v565
      %v567 = vpop.f32.mrb[0].mxu0
      %v568 = vadd.f32 %v493, %v567
      %569 = vdwg.mxu0
      %v570 = vlaneseq
      %v571 = vshrl.u32 %v570, 7
      %v572 = vlaneseq
      %v573 = vand.u32 %v572, 127
      %vm574 = vcmp.le.s32.totalorder %v573, %v571
      %576 = vrot.lane.b32.xlu0 %v566, 64
      %v577 = vpop.permute.xlu0 %576
      %vm578 = vcmask 261120
      %v579 = vsel %vm578, %v566, 0
      %v581 = vsel %vm578, %v577, 0
      %583 = vmatprep.subr.mxu0 0.0
      %584 = vmatpush1.xpose.msra.mxu0 %v581
      %585 = vmatprep.subr.mxu0 0.0
      %586 = vmatpush1.xpose.msra.mxu0 0.0
      %587 = vmatprep.subr.mxu0 0.0
      %588 = vmatpush1.xpose.msra.mxu0 0.0
      %589 = vmatprep.subr.mxu0 0.0
      %590 = vmatpush1.xpose.msra.mxu0 0.0
      %591 = vmatprep.subr.mxu0 0.0
      %592 = vmatpush1.xpose.msra.mxu0 0.0
      %593 = vmatprep.subr.mxu0 0.0
      %594 = vmatpush1.xpose.msra.mxu0 0.0
      %595 = vmatprep.subr.mxu0 0.0
      %596 = vmatpush1.xpose.msra.mxu0 0.0
      %597 = vmatprep.subr.mxu0 0.0
      %598 = vmatpush1.xpose.msra.mxu0 0.0
      %599 = vmatprep.subr.mxu0 0.0
      %600 = vmatpush1.xpose.msra.mxu0 0.0
      %601 = vmatprep.subr.mxu0 0.0
      %602 = vmatpush1.xpose.msra.mxu0 0.0
      %603 = vmatprep.subr.mxu0 0.0
      %604 = vmatpush1.xpose.msra.mxu0 0.0
      %605 = vmatprep.subr.mxu0 0.0
      %606 = vmatpush1.xpose.msra.mxu0 0.0
      %607 = vmatprep.subr.mxu0 0.0
      %608 = vmatpush1.xpose.msra.mxu0 0.0
      %609 = vmatprep.subr.mxu0 0.0
      %610 = vmatpush1.xpose.msra.mxu0 0.0
      %611 = vmatprep.subr.mxu0 0.0
      %612 = vmatpush1.xpose.msra.mxu0 0.0
      %613 = vmatprep.subr.mxu0 0.0
      %614 = vmatpush1.xpose.msra.mxu0 0.0
      %615 = vmatprep.subr.mxu0 0.0
      %616 = vmatpush1.xpose.msra.mxu0 0.0
      %617 = vmatprep.subr.mxu0 0.0
      %618 = vmatpush1.xpose.msra.mxu0 0.0
      %619 = vmatprep.subr.mxu0 0.0
      %620 = vmatpush1.xpose.msra.mxu0 0.0
      %621 = vmatprep.subr.mxu0 0.0
      %622 = vmatpush1.xpose.msra.mxu0 0.0
      %623 = vmatprep.subr.mxu0 0.0
      %624 = vmatpush1.xpose.msra.mxu0 0.0
      %625 = vmatprep.subr.mxu0 0.0
      %626 = vmatpush1.xpose.msra.mxu0 0.0
      %627 = vmatprep.subr.mxu0 0.0
      %628 = vmatpush1.xpose.msra.mxu0 0.0
      %629 = vmatprep.subr.mxu0 0.0
      %630 = vmatpush1.xpose.msra.mxu0 0.0
      %631 = vmatprep.subr.mxu0 0.0
      %632 = vmatpush1.xpose.msra.mxu0 0.0
      %633 = vmatprep.subr.mxu0 0.0
      %634 = vmatpush1.xpose.msra.mxu0 0.0
      %635 = vmatprep.subr.mxu0 0.0
      %636 = vmatpush1.xpose.msra.mxu0 0.0
      %637 = vmatprep.subr.mxu0 0.0
      %638 = vmatpush1.xpose.msra.mxu0 0.0
      %639 = vmatprep.subr.mxu0 0.0
      %640 = vmatpush1.xpose.msra.mxu0 0.0
      %641 = vmatprep.subr.mxu0 0.0
      %642 = vmatpush1.xpose.msra.mxu0 0.0
      %643 = vmatprep.subr.mxu0 0.0
      %644 = vmatpush1.xpose.msra.mxu0 0.0
      %645 = vmatprep.subr.mxu0 0.0
      %646 = vmatpush1.xpose.msra.mxu0 0.0
      %647 = vmatprep.mubr.f32.mxu0 0.0
      %648 = vmatmul.mubr.f32.gmra.mrb[0].mxu0 %v579
      %v649 = vpop.f32.mrb[0].mxu0
      %v650 = vadd.f32 0.0, %v649
      %v651 = vpop.f32.mrb[0].mxu0
      %652 = vdwg.mxu0
      %v653 = vmul.f32 %v650, 0.17677669
      %v654 = vsel %vm574, %v653, -1e+30
      %vm655 = vcmask 64512
      %v656 = vsel %vm655, %v654, -inf
      %657 = vmax.xlane.f32.xlu0 %v656
      %v658 = vpop.xlane.xlu0 %657
      %v659 = vsub.f32 %v654, %v658
      %v660 = vmul.f32 %v659, 1.442695
      %v661 = vpow.pop %v660
      %v662 = vsel %vm655, %v661, 0.0
      %663 = vadd.xlane.f32.xlu0 %v662
      %v664 = vpop.xlane.xlu0 %663
      %v665 = vrcp.pop %v664
      %v666 = vmul.f32 %v661, %v665
      %v668 = vsel %vm655, %v666, 0
      %670 = vmatprep.subr.mxu0 0.0
      %671 = vmatpush1.msra.mxu0 %v568
      %672 = vmatprep.subr.mxu0 0.0
      %673 = vmatpush1.msra.mxu0 0.0
      %674 = vmatprep.subr.mxu0 0.0
      %675 = vmatpush1.msra.mxu0 0.0
      %676 = vmatprep.subr.mxu0 0.0
      %677 = vmatpush1.msra.mxu0 0.0
      %678 = vmatprep.subr.mxu0 0.0
      %679 = vmatpush1.msra.mxu0 0.0
      %680 = vmatprep.subr.mxu0 0.0
      %681 = vmatpush1.msra.mxu0 0.0
      %682 = vmatprep.subr.mxu0 0.0
      %683 = vmatpush1.msra.mxu0 0.0
      %684 = vmatprep.subr.mxu0 0.0
      %685 = vmatpush1.msra.mxu0 0.0
      %686 = vmatprep.subr.mxu0 0.0
      %687 = vmatpush1.msra.mxu0 0.0
      %688 = vmatprep.subr.mxu0 0.0
      %689 = vmatpush1.msra.mxu0 0.0
      %690 = vmatprep.subr.mxu0 0.0
      %691 = vmatpush1.msra.mxu0 0.0
      %692 = vmatprep.subr.mxu0 0.0
      %693 = vmatpush1.msra.mxu0 0.0
      %694 = vmatprep.subr.mxu0 0.0
      %695 = vmatpush1.msra.mxu0 0.0
      %696 = vmatprep.subr.mxu0 0.0
      %697 = vmatpush1.msra.mxu0 0.0
      %698 = vmatprep.subr.mxu0 0.0
      %699 = vmatpush1.msra.mxu0 0.0
      %700 = vmatprep.subr.mxu0 0.0
      %701 = vmatpush1.msra.mxu0 0.0
      %702 = vmatprep.subr.mxu0 0.0
      %703 = vmatpush1.msra.mxu0 0.0
      %704 = vmatprep.subr.mxu0 0.0
      %705 = vmatpush1.msra.mxu0 0.0
      %706 = vmatprep.subr.mxu0 0.0
      %707 = vmatpush1.msra.mxu0 0.0
      %708 = vmatprep.subr.mxu0 0.0
      %709 = vmatpush1.msra.mxu0 0.0
      %710 = vmatprep.subr.mxu0 0.0
      %711 = vmatpush1.msra.mxu0 0.0
      %712 = vmatprep.subr.mxu0 0.0
      %713 = vmatpush1.msra.mxu0 0.0
      %714 = vmatprep.subr.mxu0 0.0
      %715 = vmatpush1.msra.mxu0 0.0
      %716 = vmatprep.subr.mxu0 0.0
      %717 = vmatpush1.msra.mxu0 0.0
      %718 = vmatprep.subr.mxu0 0.0
      %719 = vmatpush1.msra.mxu0 0.0
      %720 = vmatprep.subr.mxu0 0.0
      %721 = vmatpush1.msra.mxu0 0.0
      %722 = vmatprep.subr.mxu0 0.0
      %723 = vmatpush1.msra.mxu0 0.0
      %724 = vmatprep.subr.mxu0 0.0
      %725 = vmatpush1.msra.mxu0 0.0
      %726 = vmatprep.subr.mxu0 0.0
      %727 = vmatpush1.msra.mxu0 0.0
      %728 = vmatprep.subr.mxu0 0.0
      %729 = vmatpush1.msra.mxu0 0.0
      %730 = vmatprep.subr.mxu0 0.0
      %731 = vmatpush1.msra.mxu0 0.0
      %732 = vmatprep.subr.mxu0 0.0
      %733 = vmatpush1.msra.mxu0 0.0
      %734 = vmatprep.mubr.f32.mxu0 0.0
      %735 = vmatmul.mubr.f32.gmra.mrb[0].mxu0 %v668
      %v736 = vpop.f32.mrb[0].mxu0
      %v737 = vadd.f32 0.0, %v736
      %v738 = vpop.f32.mrb[0].mxu0
      %739 = vdwg.mxu0
      %740 = vrot.lane.b32.xlu0 %v566, 96
      %v741 = vpop.permute.xlu0 %740
      %742 = vrot.lane.b32.xlu0 %v566, 32
      %v743 = vpop.permute.xlu0 %742
      %v744 = vsel %vm578, %v741, 0
      %v746 = vsel %vm578, %v743, 0
      %748 = vmatprep.subr.mxu0 0.0
      %749 = vmatpush1.xpose.msra.mxu0 %v746
      %750 = vmatprep.subr.mxu0 0.0
      %751 = vmatpush1.xpose.msra.mxu0 0.0
      %752 = vmatprep.subr.mxu0 0.0
      %753 = vmatpush1.xpose.msra.mxu0 0.0
      %754 = vmatprep.subr.mxu0 0.0
      %755 = vmatpush1.xpose.msra.mxu0 0.0
      %756 = vmatprep.subr.mxu0 0.0
      %757 = vmatpush1.xpose.msra.mxu0 0.0
      %758 = vmatprep.subr.mxu0 0.0
      %759 = vmatpush1.xpose.msra.mxu0 0.0
      %760 = vmatprep.subr.mxu0 0.0
      %761 = vmatpush1.xpose.msra.mxu0 0.0
      %762 = vmatprep.subr.mxu0 0.0
      %763 = vmatpush1.xpose.msra.mxu0 0.0
      %764 = vmatprep.subr.mxu0 0.0
      %765 = vmatpush1.xpose.msra.mxu0 0.0
      %766 = vmatprep.subr.mxu0 0.0
      %767 = vmatpush1.xpose.msra.mxu0 0.0
      %768 = vmatprep.subr.mxu0 0.0
      %769 = vmatpush1.xpose.msra.mxu0 0.0
      %770 = vmatprep.subr.mxu0 0.0
      %771 = vmatpush1.xpose.msra.mxu0 0.0
      %772 = vmatprep.subr.mxu0 0.0
      %773 = vmatpush1.xpose.msra.mxu0 0.0
      %774 = vmatprep.subr.mxu0 0.0
      %775 = vmatpush1.xpose.msra.mxu0 0.0
      %776 = vmatprep.subr.mxu0 0.0
      %777 = vmatpush1.xpose.msra.mxu0 0.0
      %778 = vmatprep.subr.mxu0 0.0
      %779 = vmatpush1.xpose.msra.mxu0 0.0
      %780 = vmatprep.subr.mxu0 0.0
      %781 = vmatpush1.xpose.msra.mxu0 0.0
      %782 = vmatprep.subr.mxu0 0.0
      %783 = vmatpush1.xpose.msra.mxu0 0.0
      %784 = vmatprep.subr.mxu0 0.0
      %785 = vmatpush1.xpose.msra.mxu0 0.0
      %786 = vmatprep.subr.mxu0 0.0
      %787 = vmatpush1.xpose.msra.mxu0 0.0
      %788 = vmatprep.subr.mxu0 0.0
      %789 = vmatpush1.xpose.msra.mxu0 0.0
      %790 = vmatprep.subr.mxu0 0.0
      %791 = vmatpush1.xpose.msra.mxu0 0.0
      %792 = vmatprep.subr.mxu0 0.0
      %793 = vmatpush1.xpose.msra.mxu0 0.0
      %794 = vmatprep.subr.mxu0 0.0
      %795 = vmatpush1.xpose.msra.mxu0 0.0
      %796 = vmatprep.subr.mxu0 0.0
      %797 = vmatpush1.xpose.msra.mxu0 0.0
      %798 = vmatprep.subr.mxu0 0.0
      %799 = vmatpush1.xpose.msra.mxu0 0.0
      %800 = vmatprep.subr.mxu0 0.0
      %801 = vmatpush1.xpose.msra.mxu0 0.0
      %802 = vmatprep.subr.mxu0 0.0
      %803 = vmatpush1.xpose.msra.mxu0 0.0
      %804 = vmatprep.subr.mxu0 0.0
      %805 = vmatpush1.xpose.msra.mxu0 0.0
      %806 = vmatprep.subr.mxu0 0.0
      %807 = vmatpush1.xpose.msra.mxu0 0.0
      %808 = vmatprep.subr.mxu0 0.0
      %809 = vmatpush1.xpose.msra.mxu0 0.0
      %810 = vmatprep.subr.mxu0 0.0
      %811 = vmatpush1.xpose.msra.mxu0 0.0
      %812 = vmatprep.mubr.f32.mxu0 0.0
      %813 = vmatmul.mubr.f32.gmra.mrb[0].mxu0 %v744
      %v814 = vpop.f32.mrb[0].mxu0
      %v815 = vadd.f32 0.0, %v814
      %v816 = vpop.f32.mrb[0].mxu0
      %817 = vdwg.mxu0
      %v818 = vmul.f32 %v815, 0.17677669
      %v819 = vsel %vm574, %v818, -1e+30
      %v820 = vsel %vm655, %v819, -inf
      %821 = vmax.xlane.f32.xlu0 %v820
      %v822 = vpop.xlane.xlu0 %821
      %v823 = vsub.f32 %v819, %v822
      %v824 = vmul.f32 %v823, 1.442695
      %v825 = vpow.pop %v824
      %v826 = vsel %vm655, %v825, 0.0
      %827 = vadd.xlane.f32.xlu0 %v826
      %v828 = vpop.xlane.xlu0 %827
      %v829 = vrcp.pop %v828
      %v830 = vmul.f32 %v825, %v829
      %832 = vrot.lane.b32.xlu0 %v568, 96
      %v833 = vpop.permute.xlu0 %832
      %v836 = vsel %vm655, %v830, 0
      %838 = vmatprep.subr.mxu0 0.0
      %839 = vmatpush1.msra.mxu0 %v833
      %840 = vmatprep.subr.mxu0 0.0
      %841 = vmatpush1.msra.mxu0 0.0
      %842 = vmatprep.subr.mxu0 0.0
      %843 = vmatpush1.msra.mxu0 0.0
      %844 = vmatprep.subr.mxu0 0.0
      %845 = vmatpush1.msra.mxu0 0.0
      %846 = vmatprep.subr.mxu0 0.0
      %847 = vmatpush1.msra.mxu0 0.0
      %848 = vmatprep.subr.mxu0 0.0
      %849 = vmatpush1.msra.mxu0 0.0
      %850 = vmatprep.subr.mxu0 0.0
      %851 = vmatpush1.msra.mxu0 0.0
      %852 = vmatprep.subr.mxu0 0.0
      %853 = vmatpush1.msra.mxu0 0.0
      %854 = vmatprep.subr.mxu0 0.0
      %855 = vmatpush1.msra.mxu0 0.0
      %856 = vmatprep.subr.mxu0 0.0
      %857 = vmatpush1.msra.mxu0 0.0
      %858 = vmatprep.subr.mxu0 0.0
      %859 = vmatpush1.msra.mxu0 0.0
      %860 = vmatprep.subr.mxu0 0.0
      %861 = vmatpush1.msra.mxu0 0.0
      %862 = vmatprep.subr.mxu0 0.0
      %863 = vmatpush1.msra.mxu0 0.0
      %864 = vmatprep.subr.mxu0 0.0
      %865 = vmatpush1.msra.mxu0 0.0
      %866 = vmatprep.subr.mxu0 0.0
      %867 = vmatpush1.msra.mxu0 0.0
      %868 = vmatprep.subr.mxu0 0.0
      %869 = vmatpush1.msra.mxu0 0.0
      %870 = vmatprep.subr.mxu0 0.0
      %871 = vmatpush1.msra.mxu0 0.0
      %872 = vmatprep.subr.mxu0 0.0
      %873 = vmatpush1.msra.mxu0 0.0
      %874 = vmatprep.subr.mxu0 0.0
      %875 = vmatpush1.msra.mxu0 0.0
      %876 = vmatprep.subr.mxu0 0.0
      %877 = vmatpush1.msra.mxu0 0.0
      %878 = vmatprep.subr.mxu0 0.0
      %879 = vmatpush1.msra.mxu0 0.0
      %880 = vmatprep.subr.mxu0 0.0
      %881 = vmatpush1.msra.mxu0 0.0
      %882 = vmatprep.subr.mxu0 0.0
      %883 = vmatpush1.msra.mxu0 0.0
      %884 = vmatprep.subr.mxu0 0.0
      %885 = vmatpush1.msra.mxu0 0.0
      %886 = vmatprep.subr.mxu0 0.0
      %887 = vmatpush1.msra.mxu0 0.0
      %888 = vmatprep.subr.mxu0 0.0
      %889 = vmatpush1.msra.mxu0 0.0
      %890 = vmatprep.subr.mxu0 0.0
      %891 = vmatpush1.msra.mxu0 0.0
      %892 = vmatprep.subr.mxu0 0.0
      %893 = vmatpush1.msra.mxu0 0.0
      %894 = vmatprep.subr.mxu0 0.0
      %895 = vmatpush1.msra.mxu0 0.0
      %896 = vmatprep.subr.mxu0 0.0
      %897 = vmatpush1.msra.mxu0 0.0
      %898 = vmatprep.subr.mxu0 0.0
      %899 = vmatpush1.msra.mxu0 0.0
      %900 = vmatprep.subr.mxu0 0.0
      %901 = vmatpush1.msra.mxu0 0.0
      %902 = vmatprep.mubr.f32.mxu0 0.0
      %903 = vmatmul.mubr.f32.gmra.mrb[0].mxu0 %v836
      %v904 = vpop.f32.mrb[0].mxu0
      %v905 = vadd.f32 0.0, %v904
      %v906 = vpop.f32.mrb[0].mxu0
      %907 = vdwg.mxu0
      %909 = vrot.lane.b32.xlu0 %v905, 32
      %v910 = vpop.permute.xlu0 %909
      %v912 = vsel %vm578, %v737, %v910
      %v913 = vld [vmem:[%s5] sm:$0xff]
      %v914 = vld [vmem:[%s5 + $0x8] sm:$0xff]
      %v915 = vld [vmem:[%s5 + $0x10] sm:$0xff]
      %v916 = vld [vmem:[%s5 + $0x18] sm:$0xff]
      %v917 = vld [vmem:[%s5 + $0x20] sm:$0xff]
      %v918 = vld [vmem:[%s5 + $0x28] sm:$0xff]
      %v919 = vld [vmem:[%s5 + $0x30] sm:$0xff]
      %v920 = vld [vmem:[%s5 + $0x38] sm:$0xff]
      %v921 = vld [vmem:[%s6] sm:$0x1]
      %v923 = vlaneseq
      %v924 = vshrl.u32 %v923, 7
      %v925 = vsub.s32 0, %v924
      %v926 = vrot.slane %v921, %v925
      %v929 = vsel %vm439, %v912, 0
      %931 = vmatprep.subr.mxu0 0.0
      %932 = vmatpush1.msra.mxu0 %v913
      %933 = vmatprep.subr.mxu0 0.0
      %934 = vmatpush1.msra.mxu0 %v914
      %935 = vmatprep.subr.mxu0 0.0
      %936 = vmatpush1.msra.mxu0 %v915
      %937 = vmatprep.subr.mxu0 0.0
      %938 = vmatpush1.msra.mxu0 %v916
      %939 = vmatprep.subr.mxu0 0.0
      %940 = vmatpush1.msra.mxu0 %v917
      %941 = vmatprep.subr.mxu0 0.0
      %942 = vmatpush1.msra.mxu0 %v918
      %943 = vmatprep.subr.mxu0 0.0
      %944 = vmatpush1.msra.mxu0 %v919
      %945 = vmatprep.subr.mxu0 0.0
      %946 = vmatpush1.msra.mxu0 %v920
      %947 = vmatprep.subr.mxu0 0.0
      %948 = vmatpush1.msra.mxu0 0.0
      %949 = vmatprep.subr.mxu0 0.0
      %950 = vmatpush1.msra.mxu0 0.0
      %951 = vmatprep.subr.mxu0 0.0
      %952 = vmatpush1.msra.mxu0 0.0
      %953 = vmatprep.subr.mxu0 0.0
      %954 = vmatpush1.msra.mxu0 0.0
      %955 = vmatprep.subr.mxu0 0.0
      %956 = vmatpush1.msra.mxu0 0.0
      %957 = vmatprep.subr.mxu0 0.0
      %958 = vmatpush1.msra.mxu0 0.0
      %959 = vmatprep.subr.mxu0 0.0
      %960 = vmatpush1.msra.mxu0 0.0
      %961 = vmatprep.subr.mxu0 0.0
      %962 = vmatpush1.msra.mxu0 0.0
      %963 = vmatprep.subr.mxu0 0.0
      %964 = vmatpush1.msra.mxu0 0.0
      %965 = vmatprep.subr.mxu0 0.0
      %966 = vmatpush1.msra.mxu0 0.0
      %967 = vmatprep.subr.mxu0 0.0
      %968 = vmatpush1.msra.mxu0 0.0
      %969 = vmatprep.subr.mxu0 0.0
      %970 = vmatpush1.msra.mxu0 0.0
      %971 = vmatprep.subr.mxu0 0.0
      %972 = vmatpush1.msra.mxu0 0.0
      %973 = vmatprep.subr.mxu0 0.0
      %974 = vmatpush1.msra.mxu0 0.0
      %975 = vmatprep.subr.mxu0 0.0
      %976 = vmatpush1.msra.mxu0 0.0
      %977 = vmatprep.subr.mxu0 0.0
      %978 = vmatpush1.msra.mxu0 0.0
      %979 = vmatprep.subr.mxu0 0.0
      %980 = vmatpush1.msra.mxu0 0.0
      %981 = vmatprep.subr.mxu0 0.0
      %982 = vmatpush1.msra.mxu0 0.0
      %983 = vmatprep.subr.mxu0 0.0
      %984 = vmatpush1.msra.mxu0 0.0
      %985 = vmatprep.subr.mxu0 0.0
      %986 = vmatpush1.msra.mxu0 0.0
      %987 = vmatprep.subr.mxu0 0.0
      %988 = vmatpush1.msra.mxu0 0.0
      %989 = vmatprep.subr.mxu0 0.0
      %990 = vmatpush1.msra.mxu0 0.0
      %991 = vmatprep.subr.mxu0 0.0
      %992 = vmatpush1.msra.mxu0 0.0
      %993 = vmatprep.subr.mxu0 0.0
      %994 = vmatpush1.msra.mxu0 0.0
      %995 = vmatprep.mubr.f32.mxu0 0.0
      %996 = vmatmul.mubr.f32.gmra.mrb[0].mxu0 %v929
      %v997 = vpop.f32.mrb[0].mxu0
      %v998 = vadd.f32 %v926, %v997
      %v999 = vpop.f32.mrb[0].mxu0
      %1000 = vdwg.mxu0
      %v1001 = vadd.f32 %v436, %v998
      %v1002 = vld [vmem:[%s7] sm:$0x1]
      %v1003 = vld [vmem:[%s8] sm:$0x1]
      %v1004 = vsel %vm439, %v1001, 0.0
      %1005 = vadd.xlane.f32.xlu0 %v1004
      %v1006 = vpop.xlane.xlu0 %1005
      %v1007 = vmul.f32 %v1006, %v443
      %v1008 = vsub.f32 %v1001, %v1007
      %v1009 = vmul.f32 %v1008, %v1008
      %v1010 = vsel %vm439, %v1009, 0.0
      %1011 = vadd.xlane.f32.xlu0 %v1010
      %v1012 = vpop.xlane.xlu0 %1011
      %v1013 = vmul.f32 %v1012, %v443
      %v1014 = vadd.f32 %v1013, 1e-05
      %v1015 = vrsqrt.pop %v1014
      %v1016 = vmul.f32 %v1008, %v1015
      %v1018 = vlaneseq
      %v1019 = vshrl.u32 %v1018, 7
      %v1020 = vsub.s32 0, %v1019
      %v1021 = vrot.slane %v1002, %v1020
      %v1023 = vmul.f32 %v1016, %v1021
      %v1025 = vlaneseq
      %v1026 = vshrl.u32 %v1025, 7
      %v1027 = vsub.s32 0, %v1026
      %v1028 = vrot.slane %v1003, %v1027
      %v1030 = vadd.f32 %v1023, %v1028
      %v1031 = vld [vmem:[%s9] sm:$0xff]
      %v1032 = vld [vmem:[%s9 + $0x8] sm:$0xff]
      %v1033 = vld [vmem:[%s9 + $0x10] sm:$0xff]
      %v1034 = vld [vmem:[%s9 + $0x18] sm:$0xff]
      %v1035 = vld [vmem:[%s9 + $0x20] sm:$0xff]
      %v1036 = vld [vmem:[%s9 + $0x28] sm:$0xff]
      %v1037 = vld [vmem:[%s9 + $0x30] sm:$0xff]
      %v1038 = vld [vmem:[%s9 + $0x38] sm:$0xff]
      %v1039 = vld [vmem:[%s9 + $0x40] sm:$0xff]
      %v1040 = vld [vmem:[%s9 + $0x48] sm:$0xff]
      %v1041 = vld [vmem:[%s9 + $0x50] sm:$0xff]
      %v1042 = vld [vmem:[%s9 + $0x58] sm:$0xff]
      %v1043 = vld [vmem:[%s9 + $0x60] sm:$0xff]
      %v1044 = vld [vmem:[%s9 + $0x68] sm:$0xff]
      %v1045 = vld [vmem:[%s9 + $0x70] sm:$0xff]
      %v1046 = vld [vmem:[%s9 + $0x78] sm:$0xff]
      %v1047 = vld [vmem:[%s10] sm:$0x3]
      %v1049 = vlaneseq
      %v1050 = vshrl.u32 %v1049, 7
      %v1051 = vsub.s32 0, %v1050
      %v1052 = vrot.slane %v1047, %v1051
      %v1053 = vlaneseq
      %v1054 = vshrl.u32 %v1053, 7
      %v1055 = vsub.s32 1, %v1054
      %v1056 = vrot.slane %v1047, %v1055
      %v1060 = vsel %vm439, %v1030, 0
      %1062 = vmatprep.subr.mxu0 %v1032
      %1063 = vmatpush1.msra.mxu0 %v1031
      %1064 = vmatprep.subr.mxu0 %v1034
      %1065 = vmatpush1.msra.mxu0 %v1033
      %1066 = vmatprep.subr.mxu0 %v1036
      %1067 = vmatpush1.msra.mxu0 %v1035
      %1068 = vmatprep.subr.mxu0 %v1038
      %1069 = vmatpush1.msra.mxu0 %v1037
      %1070 = vmatprep.subr.mxu0 %v1040
      %1071 = vmatpush1.msra.mxu0 %v1039
      %1072 = vmatprep.subr.mxu0 %v1042
      %1073 = vmatpush1.msra.mxu0 %v1041
      %1074 = vmatprep.subr.mxu0 %v1044
      %1075 = vmatpush1.msra.mxu0 %v1043
      %1076 = vmatprep.subr.mxu0 %v1046
      %1077 = vmatpush1.msra.mxu0 %v1045
      %1078 = vmatprep.subr.mxu0 0.0
      %1079 = vmatpush1.msra.mxu0 0.0
      %1080 = vmatprep.subr.mxu0 0.0
      %1081 = vmatpush1.msra.mxu0 0.0
      %1082 = vmatprep.subr.mxu0 0.0
      %1083 = vmatpush1.msra.mxu0 0.0
      %1084 = vmatprep.subr.mxu0 0.0
      %1085 = vmatpush1.msra.mxu0 0.0
      %1086 = vmatprep.subr.mxu0 0.0
      %1087 = vmatpush1.msra.mxu0 0.0
      %1088 = vmatprep.subr.mxu0 0.0
      %1089 = vmatpush1.msra.mxu0 0.0
      %1090 = vmatprep.subr.mxu0 0.0
      %1091 = vmatpush1.msra.mxu0 0.0
      %1092 = vmatprep.subr.mxu0 0.0
      %1093 = vmatpush1.msra.mxu0 0.0
      %1094 = vmatprep.subr.mxu0 0.0
      %1095 = vmatpush1.msra.mxu0 0.0
      %1096 = vmatprep.subr.mxu0 0.0
      %1097 = vmatpush1.msra.mxu0 0.0
      %1098 = vmatprep.subr.mxu0 0.0
      %1099 = vmatpush1.msra.mxu0 0.0
      %1100 = vmatprep.subr.mxu0 0.0
      %1101 = vmatpush1.msra.mxu0 0.0
      %1102 = vmatprep.subr.mxu0 0.0
      %1103 = vmatpush1.msra.mxu0 0.0
      %1104 = vmatprep.subr.mxu0 0.0
      %1105 = vmatpush1.msra.mxu0 0.0
      %1106 = vmatprep.subr.mxu0 0.0
      %1107 = vmatpush1.msra.mxu0 0.0
      %1108 = vmatprep.subr.mxu0 0.0
      %1109 = vmatpush1.msra.mxu0 0.0
      %1110 = vmatprep.subr.mxu0 0.0
      %1111 = vmatpush1.msra.mxu0 0.0
      %1112 = vmatprep.subr.mxu0 0.0
      %1113 = vmatpush1.msra.mxu0 0.0
      %1114 = vmatprep.subr.mxu0 0.0
      %1115 = vmatpush1.msra.mxu0 0.0
      %1116 = vmatprep.subr.mxu0 0.0
      %1117 = vmatpush1.msra.mxu0 0.0
      %1118 = vmatprep.subr.mxu0 0.0
      %1119 = vmatpush1.msra.mxu0 0.0
      %1120 = vmatprep.subr.mxu0 0.0
      %1121 = vmatpush1.msra.mxu0 0.0
      %1122 = vmatprep.subr.mxu0 0.0
      %1123 = vmatpush1.msra.mxu0 0.0
      %1124 = vmatprep.subr.mxu0 0.0
      %1125 = vmatpush1.msra.mxu0 0.0
      %1126 = vmatprep.mubr.f32.mxu0 0.0
      %1127 = vmatmul.mubr.f32.gmra.mrb[0].mxu0 %v1060
      %v1128 = vpop.f32.mrb[0].mxu0
      %v1129 = vadd.f32 %v1052, %v1128
      %v1130 = vpop.f32.mrb[0].mxu0
      %v1131 = vadd.f32 %v1056, %v1130
      %1132 = vdwg.mxu0
      %v1133 = vmul.f32 %v1129, 0.5
      %v1134 = vmul.f32 %v1131, 0.5
      %v1135 = vmul.f32 %v1129, 0.044715
      %v1136 = vmul.f32 %v1131, 0.044715
      %v1137 = vmul.f32 %v1135, %v1129
      %v1138 = vmul.f32 %v1136, %v1131
      %v1139 = vmul.f32 %v1137, %v1129
      %v1140 = vmul.f32 %v1138, %v1131
      %v1141 = vadd.f32 %v1129, %v1139
      %v1142 = vadd.f32 %v1131, %v1140
      %v1143 = vmul.f32 %v1141, 0.7978846
      %v1144 = vmul.f32 %v1142, 0.7978846
      %v1145 = vtanh.pop %v1143
      %v1146 = vtanh.pop %v1144
      %v1147 = vadd.f32 %v1145, 1.0
      %v1148 = vadd.f32 %v1146, 1.0
      %v1149 = vmul.f32 %v1133, %v1147
      %v1150 = vmul.f32 %v1134, %v1148
      %v1151 = vld [vmem:[%s11] sm:$0xff]
      %v1152 = vld [vmem:[%s11 + $0x8] sm:$0xff]
      %v1153 = vld [vmem:[%s11 + $0x10] sm:$0xff]
      %v1154 = vld [vmem:[%s11 + $0x18] sm:$0xff]
      %v1155 = vld [vmem:[%s11 + $0x20] sm:$0xff]
      %v1156 = vld [vmem:[%s11 + $0x28] sm:$0xff]
      %v1157 = vld [vmem:[%s11 + $0x30] sm:$0xff]
      %v1158 = vld [vmem:[%s11 + $0x38] sm:$0xff]
      %v1159 = vld [vmem:[%s11 + $0x40] sm:$0xff]
      %v1160 = vld [vmem:[%s11 + $0x48] sm:$0xff]
      %v1161 = vld [vmem:[%s11 + $0x50] sm:$0xff]
      %v1162 = vld [vmem:[%s11 + $0x58] sm:$0xff]
      %v1163 = vld [vmem:[%s11 + $0x60] sm:$0xff]
      %v1164 = vld [vmem:[%s11 + $0x68] sm:$0xff]
      %v1165 = vld [vmem:[%s11 + $0x70] sm:$0xff]
      %v1166 = vld [vmem:[%s11 + $0x78] sm:$0xff]
      %v1167 = vld [vmem:[%s11 + $0x80] sm:$0xff]
      %v1168 = vld [vmem:[%s11 + $0x88] sm:$0xff]
      %v1169 = vld [vmem:[%s11 + $0x90] sm:$0xff]
      %v1170 = vld [vmem:[%s11 + $0x98] sm:$0xff]
      %v1171 = vld [vmem:[%s11 + $0xa0] sm:$0xff]
      %v1172 = vld [vmem:[%s11 + $0xa8] sm:$0xff]
      %v1173 = vld [vmem:[%s11 + $0xb0] sm:$0xff]
      %v1174 = vld [vmem:[%s11 + $0xb8] sm:$0xff]
      %v1175 = vld [vmem:[%s11 + $0xc0] sm:$0xff]
      %v1176 = vld [vmem:[%s11 + $0xc8] sm:$0xff]
      %v1177 = vld [vmem:[%s11 + $0xd0] sm:$0xff]
      %v1178 = vld [vmem:[%s11 + $0xd8] sm:$0xff]
      %v1179 = vld [vmem:[%s11 + $0xe0] sm:$0xff]
      %v1180 = vld [vmem:[%s11 + $0xe8] sm:$0xff]
      %v1181 = vld [vmem:[%s11 + $0xf0] sm:$0xff]
      %v1182 = vld [vmem:[%s11 + $0xf8] sm:$0xff]
      %v1183 = vld [vmem:[%s12] sm:$0x1]
      %v1185 = vlaneseq
      %v1186 = vshrl.u32 %v1185, 7
      %v1187 = vsub.s32 0, %v1186
      %v1188 = vrot.slane %v1183, %v1187
      %1190 = vmatprep.subr.mxu0 0.0
      %1191 = vmatpush1.msra.mxu0 %v1151
      %1192 = vmatprep.subr.mxu0 0.0
      %1193 = vmatpush1.msra.mxu0 %v1152
      %1194 = vmatprep.subr.mxu0 0.0
      %1195 = vmatpush1.msra.mxu0 %v1153
      %1196 = vmatprep.subr.mxu0 0.0
      %1197 = vmatpush1.msra.mxu0 %v1154
      %1198 = vmatprep.subr.mxu0 0.0
      %1199 = vmatpush1.msra.mxu0 %v1155
      %1200 = vmatprep.subr.mxu0 0.0
      %1201 = vmatpush1.msra.mxu0 %v1156
      %1202 = vmatprep.subr.mxu0 0.0
      %1203 = vmatpush1.msra.mxu0 %v1157
      %1204 = vmatprep.subr.mxu0 0.0
      %1205 = vmatpush1.msra.mxu0 %v1158
      %1206 = vmatprep.subr.mxu0 0.0
      %1207 = vmatpush1.msra.mxu0 %v1159
      %1208 = vmatprep.subr.mxu0 0.0
      %1209 = vmatpush1.msra.mxu0 %v1160
      %1210 = vmatprep.subr.mxu0 0.0
      %1211 = vmatpush1.msra.mxu0 %v1161
      %1212 = vmatprep.subr.mxu0 0.0
      %1213 = vmatpush1.msra.mxu0 %v1162
      %1214 = vmatprep.subr.mxu0 0.0
      %1215 = vmatpush1.msra.mxu0 %v1163
      %1216 = vmatprep.subr.mxu0 0.0
      %1217 = vmatpush1.msra.mxu0 %v1164
      %1218 = vmatprep.subr.mxu0 0.0
      %1219 = vmatpush1.msra.mxu0 %v1165
      %1220 = vmatprep.subr.mxu0 0.0
      %1221 = vmatpush1.msra.mxu0 %v1166
      %1222 = vmatprep.subr.mxu0 0.0
      %1223 = vmatpush1.msra.mxu0 %v1167
      %1224 = vmatprep.subr.mxu0 0.0
      %1225 = vmatpush1.msra.mxu0 %v1168
      %1226 = vmatprep.subr.mxu0 0.0
      %1227 = vmatpush1.msra.mxu0 %v1169
      %1228 = vmatprep.subr.mxu0 0.0
      %1229 = vmatpush1.msra.mxu0 %v1170
      %1230 = vmatprep.subr.mxu0 0.0
      %1231 = vmatpush1.msra.mxu0 %v1171
      %1232 = vmatprep.subr.mxu0 0.0
      %1233 = vmatpush1.msra.mxu0 %v1172
      %1234 = vmatprep.subr.mxu0 0.0
      %1235 = vmatpush1.msra.mxu0 %v1173
      %1236 = vmatprep.subr.mxu0 0.0
      %1237 = vmatpush1.msra.mxu0 %v1174
      %1238 = vmatprep.subr.mxu0 0.0
      %1239 = vmatpush1.msra.mxu0 %v1175
      %1240 = vmatprep.subr.mxu0 0.0
      %1241 = vmatpush1.msra.mxu0 %v1176
      %1242 = vmatprep.subr.mxu0 0.0
      %1243 = vmatpush1.msra.mxu0 %v1177
      %1244 = vmatprep.subr.mxu0 0.0
      %1245 = vmatpush1.msra.mxu0 %v1178
      %1246 = vmatprep.subr.mxu0 0.0
      %1247 = vmatpush1.msra.mxu0 %v1179
      %1248 = vmatprep.subr.mxu0 0.0
      %1249 = vmatpush1.msra.mxu0 %v1180
      %1250 = vmatprep.subr.mxu0 0.0
      %1251 = vmatpush1.msra.mxu0 %v1181
      %1252 = vmatprep.subr.mxu0 0.0
      %1253 = vmatpush1.msra.mxu0 %v1182
      %1254 = vmatprep.mubr.f32.mxu0 %v1150
      %1255 = vmatmul.mubr.f32.gmra.mrb[0].mxu0 %v1149
      %v1256 = vpop.f32.mrb[0].mxu0
      %v1257 = vadd.f32 %v1188, %v1256
      %v1258 = vpop.f32.mrb[0].mxu0
      %1259 = vdwg.mxu0
      %v1260 = vadd.f32 %v1001, %v1257
      %1261 = vst.msk [vmem:[%s435] sm:$0xff] %vm439, %v1260
      %p1262 = scmp.lt.s32.totalorder %s24, 1
      %s1263 = scalar_select %p1262, %s24, 1
      %s1264 = smul.addr %s1263, 8
      %s1265 = scalar_lea.vmem %s13, %s1264
      // Predicated region
      $region73: #{gpt_forward.5} parent=71 // pred_check
        %p1266 = pneg %p320
      $region74: #{gpt_forward.5} parent=71 // pred_check_branch
        %1268 = sbr.rel (%p1266) target = $region76
      $region75: #{gpt_forward.5} parent=71 // pred_region
        _
      $region76: #{gpt_forward.5} parent=71 // pred_fallthru
        _
    $region72: #{gpt_forward.5} parent=5 // pred_fallthru
      _
    %p1269 = scmp.le.s32.totalorder 2, %s19
    // Predicated region
    $region77: #{gpt_forward.5} parent=5 // pred_check
      %p1270 = pneg %p1269
    $region78: #{gpt_forward.5} parent=5 // pred_check_branch
      %1272 = sbr.rel (%p1270) target = $region80
    $region79: #{gpt_forward.5} parent=5 // pred_region
      %s1273 = ssub.s32 %s19, 2
      // Predicated region
      $region81: #{gpt_forward.5} parent=79 // pred_check
        %p1274 = pneg %p326
      $region82: #{gpt_forward.5} parent=79 // pred_check_branch
        %1276 = sbr.rel (%p1274) target = $region84
      $region83: #{gpt_forward.5} parent=79 // pred_region
        %p1277 = scmp.lt.s32.totalorder %s25, 1
        %s1278 = scalar_select %p1277, %s25, 1
        %s1279 = smul.addr %s1278, 8
        %s1280 = scalar_lea.vmem %s13, %s1279
      $region84: #{gpt_forward.5} parent=79 // pred_fallthru
        _
    $region80: #{gpt_forward.5} parent=5 // pred_fallthru
      _
  $region6: #{gpt_forward.5} parent=0 // loop_footer
    %s23 = sadd.s32 1, %s19
  $region7: #{gpt_forward.5} parent=0 // loop_footer_branch
    %18 = sbr.rel target = $region3
  $region8: #{gpt_forward.5} parent=0 // loop_exit
    _

</llo_original>
